<compile_context>
chip_gen: v7x
topology: tpu7x:2x2x1
jax: 0.10.0
libtpu: 0.0.40
codegen_flags: <defaults>
</compile_context>

<pallas_src>
import functools

import jax
import jax.numpy as jnp
from jax.experimental import pallas as pl
from jax.experimental.pallas import tpu as pltpu


INPUT_DIM = 2
HIDDEN_DIMS = (128, 128, 64)
SLAB_WIDTH = 128  # 64 features + 6 head outputs + padding (lane-dense)
MAX_TILE_B = 1024  # VMEM-safe on all generations (v7x 32 MiB scoped incl.)

# per-sample costs (for the CostEstimate)
_FLOPS_PER_ROW = 2 * (2 * 128 + 128 * 128 + 128 * 64 + 64 * 96 + 96 * 64)
_TANH_PER_ROW = 128 + 128 + 64 + 96


def _mhd_pinns_kernel(coords_ref,
                      w1_ref, w2_ref, w3_ref, wh1_ref, wh2_ref, b_ref,
                      out_ref, *, use_bf16_matmul=False):
    x = coords_ref[...]                      # (tile_b, 2)

    b1 = b_ref[0:1, :]                       # (1, 128)
    b2 = b_ref[1:2, :]                       # (1, 128)
    b3 = b_ref[2:3, 0:64]                    # (1, 64)
    bh1 = b_ref[3:4, 0:96]                   # (1, 96)
    bh2 = b_ref[4:5, 0:64]                   # (1, 64)

    def mm(a, w):
        # MXU matmul; optional bf16 operand cast (tolerance decision, off by
        # default so the f32 reference check at 2e-4 still holds).
        if use_bf16_matmul:
            a = a.astype(jnp.bfloat16)
            w = w.astype(jnp.bfloat16)
        return jnp.dot(a, w, preferred_element_type=jnp.float32)

    # Layer 1 (K=2): VPU outer-product instead of an MXU dot.
    h = jnp.tanh(x[:, 0:1] * w1_ref[0:1, :] + x[:, 1:2] * w1_ref[1:2, :] + b1)

    # Layer 2: (tile_b,128) @ (128,128)
    h = jnp.tanh(mm(h, w2_ref[...]) + b2)

    # Layer 3: (tile_b,128) @ (128,64) -> shared features
    feats = jnp.tanh(mm(h, w3_ref[...]) + b3)

    # Fused head layer 1: (tile_b,64) @ (64,96) = [vel32 | mag32 | pres16 | dens16]
    hh = jnp.tanh(mm(feats, wh1_ref[...]) + bh1)

    # Fused head layer 2: block-diagonal (96,64) (cols 0-5 valid, rest zero)
    heads = mm(hh, wh2_ref[...]) + bh2

    # Two direct half-width stores: no (tile_b,128) concat temporary.
    out_ref[:, 0:64] = feats.astype(out_ref.dtype)
    out_ref[:, 64:128] = heads.astype(out_ref.dtype)


def init_params(key):
    """Deterministic PyTorch-Linear-style init: U(-1/sqrt(fan_in), 1/sqrt(fan_in)).

    Returns the flat 22-array list matching the PyTorch module layers
    (weights stored as (in_features, out_features))."""
    dims = [
        (INPUT_DIM, HIDDEN_DIMS[0]),          # main 1
        (HIDDEN_DIMS[0], HIDDEN_DIMS[1]),     # main 2
        (HIDDEN_DIMS[1], HIDDEN_DIMS[2]),     # main 3
        (HIDDEN_DIMS[2], 32), (32, 2),        # velocity head
        (HIDDEN_DIMS[2], 32), (32, 2),        # magnetic head
        (HIDDEN_DIMS[2], 16), (16, 1),        # pressure head
        (HIDDEN_DIMS[2], 16), (16, 1),        # density head
    ]
    params = []
    for (fan_in, fan_out) in dims:
        key, kw, kb = jax.random.split(key, 3)
        bound = 1.0 / jnp.sqrt(jnp.float32(fan_in))
        w = jax.random.uniform(kw, (fan_in, fan_out), jnp.float32, -bound, bound)
        b = jax.random.uniform(kb, (1, fan_out), jnp.float32, -bound, bound)
        params.append(w)
        params.append(b)
    return params  # [w1, b1, w2, b2, ...], 22 arrays


def pack_params(params):
    """Pack the 22 per-layer arrays into 6 kernel operands.

    Returns (w1 (2,128), w2 (128,128), w3 (128,64),
             wh1 (64,96), wh2 (96,64) block-diagonal zero-padded,
             b_packed (5,128) = [b1; b2; b3|0; bh1|0; bh2|0])."""
    (w1, b1, w2, b2, w3, b3,
     wv1, bv1, wv2, bv2,
     wm1, bm1, wm2, bm2,
     wp1, bp1, wp2, bp2,
     wd1, bd1, wd2, bd2) = params

    wh1 = jnp.concatenate([wv1, wm1, wp1, wd1], axis=1)          # (64, 96)
    bh1 = jnp.concatenate([bv1, bm1, bp1, bd1], axis=1)          # (1, 96)

    wh2 = jnp.zeros((96, 64), jnp.float32)
    wh2 = wh2.at[0:32, 0:2].set(wv2)     # velocity  -> cols 0-1
    wh2 = wh2.at[32:64, 2:4].set(wm2)    # magnetic  -> cols 2-3
    wh2 = wh2.at[64:80, 4:5].set(wp2)    # pressure  -> col 4
    wh2 = wh2.at[80:96, 5:6].set(wd2)    # density   -> col 5

    bh2 = jnp.zeros((1, 64), jnp.float32)
    bh2 = bh2.at[:, 0:2].set(bv2)
    bh2 = bh2.at[:, 2:4].set(bm2)
    bh2 = bh2.at[:, 4:5].set(bp2)
    bh2 = bh2.at[:, 5:6].set(bd2)

    b_packed = jnp.zeros((5, 128), jnp.float32)
    b_packed = b_packed.at[0, :].set(b1[0])
    b_packed = b_packed.at[1, :].set(b2[0])
    b_packed = b_packed.at[2, 0:64].set(b3[0])
    b_packed = b_packed.at[3, 0:96].set(bh1[0])
    b_packed = b_packed.at[4, 0:64].set(bh2[0])

    return (w1, w2, w3, wh1, wh2, b_packed)


def _choose_tile_b(batch):
    """Per-generation-friendly tile policy.

    Largest tile <= MAX_TILE_B rows that still gives >= 2 grid steps (so
    ("parallel",) can shard across both v7x TensorCores), multiple of 8
    (sublane). Tiny batches collapse to a single step."""
    if batch <= 256:
        tile = max(8, ((batch + 7) // 8) * 8)   # single padded step
        return tile
    tile = min(MAX_TILE_B, batch // 2)
    tile = max(8, (tile // 8) * 8)
    return tile


@functools.partial(jax.jit, static_argnames=("tile_b", "use_bf16_matmul"))
def mhd_pinns_forward(coords, packed_params, tile_b=None, use_bf16_matmul=False):
    B = coords.shape[0]
    if tile_b is None:
        tile_b = _choose_tile_b(B)
    assert tile_b % 8 == 0 or tile_b == B, "tile_b must be sublane-aligned"

    # Ragged-tail handling: zero-pad the batch up to a multiple of tile_b.
    B_pad = ((B + tile_b - 1) // tile_b) * tile_b
    if B_pad != B:
        coords = jnp.pad(coords, ((0, B_pad - B), (0, 0)))

    w1, w2, w3, wh1, wh2, bp = packed_params
    param_bytes = sum(int(p.size) * 4 for p in packed_params)

    # Explicit VMEM budget (bytes):
    #   coords block (tile_b, 2) lane-pads to 128 lanes -> tile_b*512 / buffer
    #   output slab (tile_b, 128) f32                   -> tile_b*512 / buffer
    #   both double-buffered, weights double-buffered, plus ~5 materialized
    #   (tile_b,128) f32 intermediates (~tile_b*2560 B).
    vmem_bytes = (2 * tile_b * 512          # coords double buffer (lane padded)
                  + 2 * tile_b * 512        # output slab double buffer
                  + 5 * tile_b * 512        # live f32 intermediates
                  + 2 * param_bytes)        # weight/bias buffers
    vmem_limit = int(min(max(2 * vmem_bytes, 16 << 20), 64 << 20))

    cost = pl.CostEstimate(
        flops=_FLOPS_PER_ROW * B_pad,
        transcendentals=_TANH_PER_ROW * B_pad,
        bytes_accessed=B_pad * INPUT_DIM * 4 + param_bytes + B_pad * SLAB_WIDTH * 4,
    )

    kernel = functools.partial(_mhd_pinns_kernel, use_bf16_matmul=use_bf16_matmul)

    slab = pl.pallas_call(
        kernel,
        out_shape=jax.ShapeDtypeStruct((B_pad, SLAB_WIDTH), jnp.float32),
        grid_spec=pltpu.PrefetchScalarGridSpec(
            num_scalar_prefetch=0,
            grid=(B_pad // tile_b,),
            in_specs=[
                pl.BlockSpec((tile_b, INPUT_DIM), lambda i: (i, 0)),
                # Weight / bias blocks: index_map is constant, so Pallas only
                # DMAs them once (no per-step refetch).
                pl.BlockSpec(w1.shape, lambda i: (0, 0)),
                pl.BlockSpec(w2.shape, lambda i: (0, 0)),
                pl.BlockSpec(w3.shape, lambda i: (0, 0)),
                pl.BlockSpec(wh1.shape, lambda i: (0, 0)),
                pl.BlockSpec(wh2.shape, lambda i: (0, 0)),
                pl.BlockSpec(bp.shape, lambda i: (0, 0)),
            ],
            out_specs=pl.BlockSpec((tile_b, SLAB_WIDTH), lambda i: (i, 0)),
        ),
        compiler_params=pltpu.CompilerParams(
            dimension_semantics=("parallel",),
            vmem_limit_bytes=vmem_limit,
        ),
        cost_estimate=cost,
    )(coords, w1, w2, w3, wh1, wh2, bp)

    slab = slab[:B]
    return {
        "features": slab[:, 0:64],
        "velocity": slab[:, 64:66],
        "magnetic": slab[:, 66:68],
        "pressure": slab[:, 68:69],
        "density": slab[:, 69:70],
    }


def reference_forward(coords, params):
    """Pure-JAX reference matching the PyTorch module semantics."""
    (w1, b1, w2, b2, w3, b3,
     wv1, bv1, wv2, bv2,
     wm1, bm1, wm2, bm2,
     wp1, bp1, wp2, bp2,
     wd1, bd1, wd2, bd2) = params
    h = jnp.tanh(coords @ w1 + b1)
    h = jnp.tanh(h @ w2 + b2)
    feats = jnp.tanh(h @ w3 + b3)
    vel = jnp.tanh(feats @ wv1 + bv1) @ wv2 + bv2
    mag = jnp.tanh(feats @ wm1 + bm1) @ wm2 + bm2
    pres = jnp.tanh(feats @ wp1 + bp1) @ wp2 + bp2
    dens = jnp.tanh(feats @ wd1 + bd1) @ wd2 + bd2
    return {"velocity": vel, "magnetic": mag, "pressure": pres,
            "density": dens, "features": feats}


# TODO(synk): MorletWaveletLayer / singularity_network (predict_singularities)
# are not part of forward() and are not implemented here.


if __name__ == "__main__":
    key = jax.random.PRNGKey(0)
    k_params, k_coords = jax.random.split(key)

    params = init_params(k_params)
    packed = pack_params(params)

    batch = 500  # deliberately not a multiple of the tile: exercises padding
    coords = jax.random.normal(k_coords, (batch, INPUT_DIM), jnp.float32)

    # Auto tile policy: batch=500 -> tile_b=248 (grid=2+pad) keeps both v7x
    # TensorCores busy; large collocation batches get ~1K-row tiles.
    out = mhd_pinns_forward(coords, packed)
    out = jax.tree_util.tree_map(jax.block_until_ready, out)

    ref = reference_forward(coords, params)
    for name in ("velocity", "magnetic", "pressure", "density", "features"):
        assert out[name].shape == ref[name].shape, name
        err = float(jnp.max(jnp.abs(out[name] - ref[name])))
        assert err < 2e-4, f"{name} mismatch: {err}"

    print("KERNEL_OK")
</pallas_src>

<mosaic_0001>
module attributes {stable_mosaic.version = 11 : i64} {
  func.func @_mhd_pinns_kernel(%arg0: i32, %arg1: memref<248x2xf32, #tpu.memory_space<vmem>>, %arg2: memref<2x128xf32, #tpu.memory_space<vmem>>, %arg3: memref<128x128xf32, #tpu.memory_space<vmem>>, %arg4: memref<128x64xf32, #tpu.memory_space<vmem>>, %arg5: memref<64x96xf32, #tpu.memory_space<vmem>>, %arg6: memref<96x64xf32, #tpu.memory_space<vmem>>, %arg7: memref<5x128xf32, #tpu.memory_space<vmem>>, %arg8: memref<248x128xf32, #tpu.memory_space<vmem>>) attributes {dimension_semantics = [#tpu.dimension_semantics<parallel>], iteration_bounds = array<i64: 3>, scalar_prefetch = 0 : i64, scratch_operands = 0 : i64, tpu.core_type = #tpu.core_type<tc>, window_params = [{transform_indices = @transform_0, window_bounds = array<i64: 248, 2>}, {pipeline_mode = #tpu.pipeline_mode<synchronous>, transform_indices = @transform_1, window_bounds = array<i64: 2, 128>}, {pipeline_mode = #tpu.pipeline_mode<synchronous>, transform_indices = @transform_2, window_bounds = array<i64: 128, 128>}, {pipeline_mode = #tpu.pipeline_mode<synchronous>, transform_indices = @transform_3, window_bounds = array<i64: 128, 64>}, {pipeline_mode = #tpu.pipeline_mode<synchronous>, transform_indices = @transform_4, window_bounds = array<i64: 64, 96>}, {pipeline_mode = #tpu.pipeline_mode<synchronous>, transform_indices = @transform_5, window_bounds = array<i64: 96, 64>}, {pipeline_mode = #tpu.pipeline_mode<synchronous>, transform_indices = @transform_6, window_bounds = array<i64: 5, 128>}, {transform_indices = @transform_7, window_bounds = array<i64: 248, 128>}]} {
    %c0 = arith.constant 0 : index
    %c0_0 = arith.constant 0 : index
    %0 = vector.load %arg1[%c0, %c0_0] : memref<248x2xf32, #tpu.memory_space<vmem>>, vector<248x2xf32>
    %c0_1 = arith.constant 0 : index
    %c0_2 = arith.constant 0 : index
    %1 = vector.load %arg7[%c0_1, %c0_2] : memref<5x128xf32, #tpu.memory_space<vmem>>, vector<1x128xf32>
    %c1 = arith.constant 1 : index
    %c0_3 = arith.constant 0 : index
    %2 = vector.load %arg7[%c1, %c0_3] : memref<5x128xf32, #tpu.memory_space<vmem>>, vector<1x128xf32>
    %c2 = arith.constant 2 : index
    %c0_4 = arith.constant 0 : index
    %3 = vector.load %arg7[%c2, %c0_4] : memref<5x128xf32, #tpu.memory_space<vmem>>, vector<1x64xf32>
    %c3 = arith.constant 3 : index
    %c0_5 = arith.constant 0 : index
    %4 = vector.load %arg7[%c3, %c0_5] : memref<5x128xf32, #tpu.memory_space<vmem>>, vector<1x96xf32>
    %c4 = arith.constant 4 : index
    %c0_6 = arith.constant 0 : index
    %5 = vector.load %arg7[%c4, %c0_6] : memref<5x128xf32, #tpu.memory_space<vmem>>, vector<1x64xf32>
    %6 = vector.extract_strided_slice %0 {offsets = [0, 0], sizes = [248, 1], strides = [1, 1]} : vector<248x2xf32> to vector<248x1xf32>
    %c0_7 = arith.constant 0 : index
    %c0_8 = arith.constant 0 : index
    %7 = vector.load %arg2[%c0_7, %c0_8] : memref<2x128xf32, #tpu.memory_space<vmem>>, vector<1x128xf32>
    %8 = vector.broadcast %6 : vector<248x1xf32> to vector<248x128xf32>
    %9 = vector.broadcast %7 : vector<1x128xf32> to vector<248x128xf32>
    %10 = arith.mulf %8, %9 : vector<248x128xf32>
    %11 = vector.extract_strided_slice %0 {offsets = [0, 1], sizes = [248, 1], strides = [1, 1]} : vector<248x2xf32> to vector<248x1xf32>
    %c1_9 = arith.constant 1 : index
    %c0_10 = arith.constant 0 : index
    %12 = vector.load %arg2[%c1_9, %c0_10] : memref<2x128xf32, #tpu.memory_space<vmem>>, vector<1x128xf32>
    %13 = vector.broadcast %11 : vector<248x1xf32> to vector<248x128xf32>
    %14 = vector.broadcast %12 : vector<1x128xf32> to vector<248x128xf32>
    %15 = arith.mulf %13, %14 : vector<248x128xf32>
    %16 = arith.addf %10, %15 : vector<248x128xf32>
    %17 = vector.broadcast %1 : vector<1x128xf32> to vector<248x128xf32>
    %18 = arith.addf %16, %17 : vector<248x128xf32>
    %19 = math.tanh %18 : vector<248x128xf32>
    %c0_11 = arith.constant 0 : index
    %c0_12 = arith.constant 0 : index
    %20 = vector.load %arg3[%c0_11, %c0_12] : memref<128x128xf32, #tpu.memory_space<vmem>>, vector<128x128xf32>
    %cst = arith.constant dense<0.000000e+00> : vector<248x128xf32>
    %21 = tpu.matmul %19, %20, %cst {dimension_numbers = #tpu.dot_dimension_numbers<[1], [0], [0], [1], [0, 0, 1, 1], [], []>} : vector<248x128xf32>, vector<128x128xf32>, vector<248x128xf32> -> vector<248x128xf32>
    %22 = vector.broadcast %2 : vector<1x128xf32> to vector<248x128xf32>
    %23 = arith.addf %21, %22 : vector<248x128xf32>
    %24 = math.tanh %23 : vector<248x128xf32>
    %c0_13 = arith.constant 0 : index
    %c0_14 = arith.constant 0 : index
    %25 = vector.load %arg4[%c0_13, %c0_14] : memref<128x64xf32, #tpu.memory_space<vmem>>, vector<128x64xf32>
    %cst_15 = arith.constant dense<0.000000e+00> : vector<248x64xf32>
    %26 = tpu.matmul %24, %25, %cst_15 {dimension_numbers = #tpu.dot_dimension_numbers<[1], [0], [0], [1], [0, 0, 1, 1], [], []>} : vector<248x128xf32>, vector<128x64xf32>, vector<248x64xf32> -> vector<248x64xf32>
    %27 = vector.broadcast %3 : vector<1x64xf32> to vector<248x64xf32>
    %28 = arith.addf %26, %27 : vector<248x64xf32>
    %29 = math.tanh %28 : vector<248x64xf32>
    %c0_16 = arith.constant 0 : index
    %c0_17 = arith.constant 0 : index
    %30 = vector.load %arg5[%c0_16, %c0_17] : memref<64x96xf32, #tpu.memory_space<vmem>>, vector<64x96xf32>
    %cst_18 = arith.constant dense<0.000000e+00> : vector<248x96xf32>
    %31 = tpu.matmul %29, %30, %cst_18 {dimension_numbers = #tpu.dot_dimension_numbers<[1], [0], [0], [1], [0, 0, 1, 1], [], []>} : vector<248x64xf32>, vector<64x96xf32>, vector<248x96xf32> -> vector<248x96xf32>
    %32 = vector.broadcast %4 : vector<1x96xf32> to vector<248x96xf32>
    %33 = arith.addf %31, %32 : vector<248x96xf32>
    %34 = math.tanh %33 : vector<248x96xf32>
    %c0_19 = arith.constant 0 : index
    %c0_20 = arith.constant 0 : index
    %35 = vector.load %arg6[%c0_19, %c0_20] : memref<96x64xf32, #tpu.memory_space<vmem>>, vector<96x64xf32>
    %cst_21 = arith.constant dense<0.000000e+00> : vector<248x64xf32>
    %36 = tpu.matmul %34, %35, %cst_21 {dimension_numbers = #tpu.dot_dimension_numbers<[1], [0], [0], [1], [0, 0, 1, 1], [], []>} : vector<248x96xf32>, vector<96x64xf32>, vector<248x64xf32> -> vector<248x64xf32>
    %37 = vector.broadcast %5 : vector<1x64xf32> to vector<248x64xf32>
    %38 = arith.addf %36, %37 : vector<248x64xf32>
    %c0_22 = arith.constant 0 : index
    %c0_23 = arith.constant 0 : index
    %39 = vector.load %arg8[%c0_22, %c0_23] : memref<248x128xf32, #tpu.memory_space<vmem>>, vector<248x64xf32>
    tpu.vector_store %arg8[%c0_22, %c0_23], %29 {strides = array<i32>} : memref<248x128xf32, #tpu.memory_space<vmem>>, vector<248x64xf32>,
    %c0_24 = arith.constant 0 : index
    %c64 = arith.constant 64 : index
    %40 = vector.load %arg8[%c0_24, %c64] : memref<248x128xf32, #tpu.memory_space<vmem>>, vector<248x64xf32>
    tpu.vector_store %arg8[%c0_24, %c64], %38 {strides = array<i32>} : memref<248x128xf32, #tpu.memory_space<vmem>>, vector<248x64xf32>,
    return
  }
  func.func @transform_0(%arg0: i32) -> (i32, i32) {
    %c0_i32 = arith.constant 0 : i32
    %c0_i32_0 = arith.constant 0 : i32
    return %arg0, %c0_i32 : i32, i32
  }
  func.func @transform_1(%arg0: i32) -> (i32, i32) {
    %c0_i32 = arith.constant 0 : i32
    %c0_i32_0 = arith.constant 0 : i32
    %c0_i32_1 = arith.constant 0 : i32
    return %c0_i32, %c0_i32_0 : i32, i32
  }
  func.func @transform_2(%arg0: i32) -> (i32, i32) {
    %c0_i32 = arith.constant 0 : i32
    %c0_i32_0 = arith.constant 0 : i32
    %c0_i32_1 = arith.constant 0 : i32
    return %c0_i32, %c0_i32_0 : i32, i32
  }
  func.func @transform_3(%arg0: i32) -> (i32, i32) {
    %c0_i32 = arith.constant 0 : i32
    %c0_i32_0 = arith.constant 0 : i32
    %c0_i32_1 = arith.constant 0 : i32
    return %c0_i32, %c0_i32_0 : i32, i32
  }
  func.func @transform_4(%arg0: i32) -> (i32, i32) {
    %c0_i32 = arith.constant 0 : i32
    %c0_i32_0 = arith.constant 0 : i32
    %c0_i32_1 = arith.constant 0 : i32
    return %c0_i32, %c0_i32_0 : i32, i32
  }
  func.func @transform_5(%arg0: i32) -> (i32, i32) {
    %c0_i32 = arith.constant 0 : i32
    %c0_i32_0 = arith.constant 0 : i32
    %c0_i32_1 = arith.constant 0 : i32
    return %c0_i32, %c0_i32_0 : i32, i32
  }
  func.func @transform_6(%arg0: i32) -> (i32, i32) {
    %c0_i32 = arith.constant 0 : i32
    %c0_i32_0 = arith.constant 0 : i32
    %c0_i32_1 = arith.constant 0 : i32
    return %c0_i32, %c0_i32_0 : i32, i32
  }
  func.func @transform_7(%arg0: i32) -> (i32, i32) {
    %c0_i32 = arith.constant 0 : i32
    %c0_i32_0 = arith.constant 0 : i32
    return %arg0, %c0_i32 : i32, i32
  }
}

</mosaic_0001>

<llo_original>
// kernel: mhd_pinns_forward.1
$region0: #{mhd_pinns_forward.1}
  #allocation0 [shape = 'u32[]', space=smem, size = 0x4, offset = 0x4, fixed_abs, tag = 'smem constant byte address 0x4 - core index']
  #allocation1 [shape = 'u32[144,128]{1,0:T(1,128)}', space=vmem, size = 0x12000, scoped, tag = 'internal scratch']
  %s0 = inlined_call_operand.vmem [shape: f32[744,2], index: 0, kind: input, shape index: {}]
  %s1 = inlined_call_operand.vmem [shape: f32[2,128], index: 1, kind: input, shape index: {}]
  %s2 = inlined_call_operand.vmem [shape: f32[128,128], index: 2, kind: input, shape index: {}]
  %s3 = inlined_call_operand.vmem [shape: f32[128,64], index: 3, kind: input, shape index: {}]
  %s4 = inlined_call_operand.vmem [shape: f32[64,96], index: 4, kind: input, shape index: {}]
  %s5 = inlined_call_operand.vmem [shape: f32[96,64], index: 5, kind: input, shape index: {}]
  %s6 = inlined_call_operand.vmem [shape: f32[5,128], index: 6, kind: input, shape index: {}]
  %s7 = inlined_call_operand.vmem [shape: f32[744,128], index: 7, kind: output, shape index: {}]
  %s8 = sld [smem:[#allocation0]]
  $region61: #{mhd_pinns_forward.1} parent=0
    _
  %s10 = ssub.s32 1, %s8
  %s11 = scalar_select 0, %s10, %s8
  loop: start=0, step=1, limit=5
  $region2: #{mhd_pinns_forward.1} parent=0 // loop_pre_header
    _
  $region3: #{mhd_pinns_forward.1} parent=0 // loop_header
    %s13 = sphi 0, %s17
    %p14 = scmp.ge.s32.totalorder %s13, 5
    %s23 = sphi 0, %s25
    %s26 = sphi 0, %s23
    %s27 = sphi 0, %s26
    %s43 = sphi 0, %s27
    %s47 = sphi 0, %s47
    %s49 = sphi 0, %s47
    %s50 = sphi 0, %s49
    %s64 = sphi 0, %s50
    %s68 = sphi 0, %s68
    %s70 = sphi 0, %s68
    %s71 = sphi 0, %s70
    %s85 = sphi 0, %s71
    %s89 = sphi 0, %s89
    %s91 = sphi 0, %s89
    %s92 = sphi 0, %s91
    %s106 = sphi 0, %s92
    %s110 = sphi 0, %s110
    %s112 = sphi 0, %s110
    %s113 = sphi 0, %s112
    %s127 = sphi 0, %s113
    %s131 = sphi 0, %s131
    %s133 = sphi 0, %s131
    %s134 = sphi 0, %s133
    %s148 = sphi 0, %s134
    %s152 = sphi 0, %s152
    %s154 = sphi 0, %s152
    %s155 = sphi 0, %s154
    %s169 = sphi 0, %s155
    %s175 = sphi 0, %s177
    %s178 = sphi 0, %s175
    %s179 = sphi 0, %s178
    %s195 = sphi 0, %s179
  $region4: #{mhd_pinns_forward.1} parent=0 // loop_header_branch
    %16 = sbr.rel (%p14) target = $region8
  $region5: #{mhd_pinns_forward.1} parent=0 // loop_body
    %s18 = ssub.s32 %s13, 1
    %s19 = ssub.s32 %s13, 2
    %s20 = sadd.s32 %s13, 1
    %s21 = ssub.s32 %s13, %s20
    %p22 = scmp.eq.s32.totalorder %s21, 0
    %s24 = sadd.s32 %s23, 1
    %s25 = scalar_select %p22, %s23, %s24
    %p28 = pneg %p22
    %p29 = scmp.eq.s32.totalorder %s13, 2
    %p30 = por %p28, %p29
    %p31 = scmp.ne.s32.totalorder %s23, %s26
    %p32 = scmp.eq.s32.totalorder %s13, 0
    %p33 = por %p31, %p32
    %p34 = scmp.ne.s32.totalorder %s23, %s26
    %p35 = scmp.eq.s32.totalorder %s18, 2
    %p36 = por %p34, %p35
    %p37 = scmp.ne.s32.totalorder %s26, %s27
    %p38 = scmp.eq.s32.totalorder %s18, 0
    %p39 = por %p37, %p38
    %p40 = scmp.ne.s32.totalorder %s26, %s27
    %p41 = scmp.eq.s32.totalorder %s19, 2
    %p42 = por %p40, %p41
    %p44 = scmp.ne.s32.totalorder %s27, %s43
    %p45 = scmp.eq.s32.totalorder %s19, 0
    %p46 = por %p44, %p45
    %s48 = sadd.s32 %s47, 1
    %p51 = scmp.eq.s32.totalorder %s13, 2
    %p52 = scmp.ne.s32.totalorder %s47, %s49
    %p53 = scmp.eq.s32.totalorder %s13, 0
    %p54 = por %p52, %p53
    %p55 = scmp.ne.s32.totalorder %s47, %s49
    %p56 = scmp.eq.s32.totalorder %s18, 2
    %p57 = por %p55, %p56
    %p58 = scmp.ne.s32.totalorder %s49, %s50
    %p59 = scmp.eq.s32.totalorder %s18, 0
    %p60 = por %p58, %p59
    %p61 = scmp.ne.s32.totalorder %s49, %s50
    %p62 = scmp.eq.s32.totalorder %s19, 2
    %p63 = por %p61, %p62
    %p65 = scmp.ne.s32.totalorder %s50, %s64
    %p66 = scmp.eq.s32.totalorder %s19, 0
    %p67 = por %p65, %p66
    %s69 = sadd.s32 %s68, 1
    %p72 = scmp.eq.s32.totalorder %s13, 2
    %p73 = scmp.ne.s32.totalorder %s68, %s70
    %p74 = scmp.eq.s32.totalorder %s13, 0
    %p75 = por %p73, %p74
    %p76 = scmp.ne.s32.totalorder %s68, %s70
    %p77 = scmp.eq.s32.totalorder %s18, 2
    %p78 = por %p76, %p77
    %p79 = scmp.ne.s32.totalorder %s70, %s71
    %p80 = scmp.eq.s32.totalorder %s18, 0
    %p81 = por %p79, %p80
    %p82 = scmp.ne.s32.totalorder %s70, %s71
    %p83 = scmp.eq.s32.totalorder %s19, 2
    %p84 = por %p82, %p83
    %p86 = scmp.ne.s32.totalorder %s71, %s85
    %p87 = scmp.eq.s32.totalorder %s19, 0
    %p88 = por %p86, %p87
    %s90 = sadd.s32 %s89, 1
    %p93 = scmp.eq.s32.totalorder %s13, 2
    %p94 = scmp.ne.s32.totalorder %s89, %s91
    %p95 = scmp.eq.s32.totalorder %s13, 0
    %p96 = por %p94, %p95
    %p97 = scmp.ne.s32.totalorder %s89, %s91
    %p98 = scmp.eq.s32.totalorder %s18, 2
    %p99 = por %p97, %p98
    %p100 = scmp.ne.s32.totalorder %s91, %s92
    %p101 = scmp.eq.s32.totalorder %s18, 0
    %p102 = por %p100, %p101
    %p103 = scmp.ne.s32.totalorder %s91, %s92
    %p104 = scmp.eq.s32.totalorder %s19, 2
    %p105 = por %p103, %p104
    %p107 = scmp.ne.s32.totalorder %s92, %s106
    %p108 = scmp.eq.s32.totalorder %s19, 0
    %p109 = por %p107, %p108
    %s111 = sadd.s32 %s110, 1
    %p114 = scmp.eq.s32.totalorder %s13, 2
    %p115 = scmp.ne.s32.totalorder %s110, %s112
    %p116 = scmp.eq.s32.totalorder %s13, 0
    %p117 = por %p115, %p116
    %p118 = scmp.ne.s32.totalorder %s110, %s112
    %p119 = scmp.eq.s32.totalorder %s18, 2
    %p120 = por %p118, %p119
    %p121 = scmp.ne.s32.totalorder %s112, %s113
    %p122 = scmp.eq.s32.totalorder %s18, 0
    %p123 = por %p121, %p122
    %p124 = scmp.ne.s32.totalorder %s112, %s113
    %p125 = scmp.eq.s32.totalorder %s19, 2
    %p126 = por %p124, %p125
    %p128 = scmp.ne.s32.totalorder %s113, %s127
    %p129 = scmp.eq.s32.totalorder %s19, 0
    %p130 = por %p128, %p129
    %s132 = sadd.s32 %s131, 1
    %p135 = scmp.eq.s32.totalorder %s13, 2
    %p136 = scmp.ne.s32.totalorder %s131, %s133
    %p137 = scmp.eq.s32.totalorder %s13, 0
    %p138 = por %p136, %p137
    %p139 = scmp.ne.s32.totalorder %s131, %s133
    %p140 = scmp.eq.s32.totalorder %s18, 2
    %p141 = por %p139, %p140
    %p142 = scmp.ne.s32.totalorder %s133, %s134
    %p143 = scmp.eq.s32.totalorder %s18, 0
    %p144 = por %p142, %p143
    %p145 = scmp.ne.s32.totalorder %s133, %s134
    %p146 = scmp.eq.s32.totalorder %s19, 2
    %p147 = por %p145, %p146
    %p149 = scmp.ne.s32.totalorder %s134, %s148
    %p150 = scmp.eq.s32.totalorder %s19, 0
    %p151 = por %p149, %p150
    %s153 = sadd.s32 %s152, 1
    %p156 = scmp.eq.s32.totalorder %s13, 2
    %p157 = scmp.ne.s32.totalorder %s152, %s154
    %p158 = scmp.eq.s32.totalorder %s13, 0
    %p159 = por %p157, %p158
    %p160 = scmp.ne.s32.totalorder %s152, %s154
    %p161 = scmp.eq.s32.totalorder %s18, 2
    %p162 = por %p160, %p161
    %p163 = scmp.ne.s32.totalorder %s154, %s155
    %p164 = scmp.eq.s32.totalorder %s18, 0
    %p165 = por %p163, %p164
    %p166 = scmp.ne.s32.totalorder %s154, %s155
    %p167 = scmp.eq.s32.totalorder %s19, 2
    %p168 = por %p166, %p167
    %p170 = scmp.ne.s32.totalorder %s155, %s169
    %p171 = scmp.eq.s32.totalorder %s19, 0
    %p172 = por %p170, %p171
    %s173 = ssub.s32 %s13, %s20
    %p174 = scmp.eq.s32.totalorder %s173, 0
    %s176 = sadd.s32 %s175, 1
    %s177 = scalar_select %p174, %s175, %s176
    %p180 = pneg %p174
    %p181 = scmp.eq.s32.totalorder %s13, 2
    %p182 = por %p180, %p181
    %p183 = scmp.ne.s32.totalorder %s175, %s178
    %p184 = scmp.eq.s32.totalorder %s13, 0
    %p185 = por %p183, %p184
    %p186 = scmp.ne.s32.totalorder %s175, %s178
    %p187 = scmp.eq.s32.totalorder %s18, 2
    %p188 = por %p186, %p187
    %p189 = scmp.ne.s32.totalorder %s178, %s179
    %p190 = scmp.eq.s32.totalorder %s18, 0
    %p191 = por %p189, %p190
    %p192 = scmp.ne.s32.totalorder %s178, %s179
    %p193 = scmp.eq.s32.totalorder %s19, 2
    %p194 = por %p192, %p193
    %p196 = scmp.ne.s32.totalorder %s179, %s195
    %p197 = scmp.eq.s32.totalorder %s19, 0
    %p198 = por %p196, %p197
    %p199 = scmp.le.s32.totalorder 1, %s13
    %p200 = scmp.lt.s32.totalorder %s13, 4
    %p201 = pnand %p199, %p200
    %p202 = pneg %p201
    // Predicated region
    $region9: #{mhd_pinns_forward.1} parent=5 // pred_check
      _
    $region10: #{mhd_pinns_forward.1} parent=5 // pred_check_branch
      %204 = sbr.rel (%p201) target = $region12
    $region11: #{mhd_pinns_forward.1} parent=5 // pred_region
      %s205 = ssub.s32 %s13, 1
      // Predicated region
      $region13: #{mhd_pinns_forward.1} parent=11 // pred_check
        %p206 = pneg %p60
      $region14: #{mhd_pinns_forward.1} parent=11 // pred_check_branch
        %208 = sbr.rel (%p206) target = $region16
      $region15: #{mhd_pinns_forward.1} parent=11 // pred_region
        _
      $region16: #{mhd_pinns_forward.1} parent=11 // pred_fallthru
        _
      // Predicated region
      $region17: #{mhd_pinns_forward.1} parent=11 // pred_check
        %p209 = pneg %p81
      $region18: #{mhd_pinns_forward.1} parent=11 // pred_check_branch
        %211 = sbr.rel (%p209) target = $region20
      $region19: #{mhd_pinns_forward.1} parent=11 // pred_region
        _
      $region20: #{mhd_pinns_forward.1} parent=11 // pred_fallthru
        _
      // Predicated region
      $region21: #{mhd_pinns_forward.1} parent=11 // pred_check
        %p212 = pneg %p102
      $region22: #{mhd_pinns_forward.1} parent=11 // pred_check_branch
        %214 = sbr.rel (%p212) target = $region24
      $region23: #{mhd_pinns_forward.1} parent=11 // pred_region
        _
      $region24: #{mhd_pinns_forward.1} parent=11 // pred_fallthru
        _
      // Predicated region
      $region25: #{mhd_pinns_forward.1} parent=11 // pred_check
        %p215 = pneg %p123
      $region26: #{mhd_pinns_forward.1} parent=11 // pred_check_branch
        %217 = sbr.rel (%p215) target = $region28
      $region27: #{mhd_pinns_forward.1} parent=11 // pred_region
        _
      $region28: #{mhd_pinns_forward.1} parent=11 // pred_fallthru
        _
      // Predicated region
      $region29: #{mhd_pinns_forward.1} parent=11 // pred_check
        %p218 = pneg %p144
      $region30: #{mhd_pinns_forward.1} parent=11 // pred_check_branch
        %220 = sbr.rel (%p218) target = $region32
      $region31: #{mhd_pinns_forward.1} parent=11 // pred_region
        _
      $region32: #{mhd_pinns_forward.1} parent=11 // pred_fallthru
        _
      // Predicated region
      $region33: #{mhd_pinns_forward.1} parent=11 // pred_check
        %p221 = pneg %p165
      $region34: #{mhd_pinns_forward.1} parent=11 // pred_check_branch
        %223 = sbr.rel (%p221) target = $region36
      $region35: #{mhd_pinns_forward.1} parent=11 // pred_region
        _
      $region36: #{mhd_pinns_forward.1} parent=11 // pred_fallthru
        _
    $region12: #{mhd_pinns_forward.1} parent=5 // pred_fallthru
      _
    %p224 = scmp.lt.s32.totalorder %s13, 3
    // Predicated region
    $region37: #{mhd_pinns_forward.1} parent=5 // pred_check
      %p225 = pneg %p224
    $region38: #{mhd_pinns_forward.1} parent=5 // pred_check_branch
      %227 = sbr.rel (%p225) target = $region40
    $region39: #{mhd_pinns_forward.1} parent=5 // pred_region
      // Predicated region
      $region41: #{mhd_pinns_forward.1} parent=39 // pred_check
        %p228 = pneg %p33
      $region42: #{mhd_pinns_forward.1} parent=39 // pred_check_branch
        %230 = sbr.rel (%p228) target = $region44
      $region43: #{mhd_pinns_forward.1} parent=39 // pred_region
        %s231 = smul.u32 31, %s13
        %p232 = scmp.lt.s32.totalorder %s231, 92
        %s233 = scalar_select %p232, %s231, 92
        %s234 = smul.addr %s233, 8
        %s235 = scalar_lea.vmem %s0, %s234
        %s236 = smul.u32 31, %s13
      $region44: #{mhd_pinns_forward.1} parent=39 // pred_fallthru
        _
    $region40: #{mhd_pinns_forward.1} parent=5 // pred_fallthru
      _
    %p237 = scmp.le.s32.totalorder 1, %s13
    %p238 = scmp.lt.s32.totalorder %s13, 4
    %p239 = pnand %p237, %p238
    %p240 = pneg %p239
    // Predicated region
    $region45: #{mhd_pinns_forward.1} parent=5 // pred_check
      _
    $region46: #{mhd_pinns_forward.1} parent=5 // pred_check_branch
      %242 = sbr.rel (%p239) target = $region48
    $region47: #{mhd_pinns_forward.1} parent=5 // pred_region
      %s243 = ssub.s32 %s13, 1
      %s244 = smul.u32 31, %s18
      %p245 = scmp.lt.s32.totalorder %s244, 92
      %s246 = scalar_select %p245, %s244, 92
      %s247 = smul.addr %s246, 8
      %s248 = scalar_lea.vmem %s0, %s247
      %p249 = pneg %p39
      %p250 = pneg %p36
      %p251 = pneg %p60
      %p252 = pneg %p57
      %p253 = pneg %p81
      %p254 = pneg %p78
      %p255 = pneg %p102
      %p256 = pneg %p99
      %p257 = pneg %p123
      %p258 = pneg %p120
      %p259 = pneg %p144
      %p260 = pneg %p141
      %p261 = pneg %p165
      %p262 = pneg %p162
      %p263 = pneg %p191
      %p264 = pneg %p188
      %s265 = smul.u32 31, %s18
      %p266 = scmp.lt.s32.totalorder %s265, 92
      %s267 = scalar_select %p266, %s265, 92
      %s268 = smul.addr %s267, 8
      %s269 = scalar_lea.vmem %s7, %s268
      %s270 = smul.u32 31, %s18
      %p271 = scmp.lt.s32.totalorder %s270, 92
      %s272 = scalar_select %p271, %s270, 92
      %s273 = smul.addr %s272, 8
      %s274 = scalar_lea.vmem %s0, %s273
      %s275 = smul.u32 31, %s18
      %s276 = smul.u32 31, %s18
      %p277 = scmp.lt.s32.totalorder %s276, 92
      %s278 = scalar_select %p277, %s276, 92
      %s279 = smul.addr %s278, 8
      %s280 = scalar_lea.vmem %s7, %s279
      %s281 = smul.u32 31, %s18
      %v282 = vld [vmem:[%s274] sm:$0xff]
      %v283 = vld [vmem:[%s274 + $0x8] sm:$0xff]
      %v284 = vld [vmem:[%s274 + $0x10] sm:$0xff]
      %v285 = vld [vmem:[%s274 + $0x18] sm:$0xff]
      %v286 = vld [vmem:[%s274 + $0x20] sm:$0xff]
      %v287 = vld [vmem:[%s274 + $0x28] sm:$0xff]
      %v288 = vld [vmem:[%s274 + $0x30] sm:$0xff]
      %v289 = vld [vmem:[%s274 + $0x38] sm:$0xff]
      %v290 = vld [vmem:[%s274 + $0x40] sm:$0xff]
      %v291 = vld [vmem:[%s274 + $0x48] sm:$0xff]
      %v292 = vld [vmem:[%s274 + $0x50] sm:$0xff]
      %v293 = vld [vmem:[%s274 + $0x58] sm:$0xff]
      %v294 = vld [vmem:[%s274 + $0x60] sm:$0xff]
      %v295 = vld [vmem:[%s274 + $0x68] sm:$0xff]
      %v296 = vld [vmem:[%s274 + $0x70] sm:$0xff]
      %v297 = vld [vmem:[%s274 + $0x78] sm:$0xff]
      %v298 = vld [vmem:[%s274 + $0x80] sm:$0xff]
      %v299 = vld [vmem:[%s274 + $0x88] sm:$0xff]
      %v300 = vld [vmem:[%s274 + $0x90] sm:$0xff]
      %v301 = vld [vmem:[%s274 + $0x98] sm:$0xff]
      %v302 = vld [vmem:[%s274 + $0xa0] sm:$0xff]
      %v303 = vld [vmem:[%s274 + $0xa8] sm:$0xff]
      %v304 = vld [vmem:[%s274 + $0xb0] sm:$0xff]
      %v305 = vld [vmem:[%s274 + $0xb8] sm:$0xff]
      %v306 = vld [vmem:[%s274 + $0xc0] sm:$0xff]
      %v307 = vld [vmem:[%s274 + $0xc8] sm:$0xff]
      %v308 = vld [vmem:[%s274 + $0xd0] sm:$0xff]
      %v309 = vld [vmem:[%s274 + $0xd8] sm:$0xff]
      %v310 = vld [vmem:[%s274 + $0xe0] sm:$0xff]
      %v311 = vld [vmem:[%s274 + $0xe8] sm:$0xff]
      %v312 = vld [vmem:[%s274 + $0xf0] sm:$0xff]
      %v313 = vld [vmem:[%s6] sm:$0x1]
      %v314 = vld [vmem:[%s6 + $0x1] sm:$0x1]
      %v315 = vld [vmem:[%s6 + $0x2] sm:$0x1]
      %v316 = vld [vmem:[%s6 + $0x3] sm:$0x1]
      %v317 = vld [vmem:[%s6 + $0x4] sm:$0x1]
      %v318 = vld [vmem:[%s1] sm:$0x1]
      %320 = vset.pattern.permute.xlu0 0
      %321 = vperm.xlu0 %320, %v282
      %v322 = vpop.permute.xlu0 %321
      %325 = vset.pattern.permute.xlu0 0
      %326 = vperm.xlu0 %325, %v283
      %v327 = vpop.permute.xlu0 %326
      %330 = vset.pattern.permute.xlu0 0
      %331 = vperm.xlu0 %330, %v284
      %v332 = vpop.permute.xlu0 %331
      %335 = vset.pattern.permute.xlu0 0
      %336 = vperm.xlu0 %335, %v285
      %v337 = vpop.permute.xlu0 %336
      %340 = vset.pattern.permute.xlu0 0
      %341 = vperm.xlu0 %340, %v286
      %v342 = vpop.permute.xlu0 %341
      %345 = vset.pattern.permute.xlu0 0
      %346 = vperm.xlu0 %345, %v287
      %v347 = vpop.permute.xlu0 %346
      %350 = vset.pattern.permute.xlu0 0
      %351 = vperm.xlu0 %350, %v288
      %v352 = vpop.permute.xlu0 %351
      %355 = vset.pattern.permute.xlu0 0
      %356 = vperm.xlu0 %355, %v289
      %v357 = vpop.permute.xlu0 %356
      %360 = vset.pattern.permute.xlu0 0
      %361 = vperm.xlu0 %360, %v290
      %v362 = vpop.permute.xlu0 %361
      %365 = vset.pattern.permute.xlu0 0
      %366 = vperm.xlu0 %365, %v291
      %v367 = vpop.permute.xlu0 %366
      %370 = vset.pattern.permute.xlu0 0
      %371 = vperm.xlu0 %370, %v292
      %v372 = vpop.permute.xlu0 %371
      %375 = vset.pattern.permute.xlu0 0
      %376 = vperm.xlu0 %375, %v293
      %v377 = vpop.permute.xlu0 %376
      %380 = vset.pattern.permute.xlu0 0
      %381 = vperm.xlu0 %380, %v294
      %v382 = vpop.permute.xlu0 %381
      %385 = vset.pattern.permute.xlu0 0
      %386 = vperm.xlu0 %385, %v295
      %v387 = vpop.permute.xlu0 %386
      %390 = vset.pattern.permute.xlu0 0
      %391 = vperm.xlu0 %390, %v296
      %v392 = vpop.permute.xlu0 %391
      %395 = vset.pattern.permute.xlu0 0
      %396 = vperm.xlu0 %395, %v297
      %v397 = vpop.permute.xlu0 %396
      %400 = vset.pattern.permute.xlu0 0
      %401 = vperm.xlu0 %400, %v298
      %v402 = vpop.permute.xlu0 %401
      %405 = vset.pattern.permute.xlu0 0
      %406 = vperm.xlu0 %405, %v299
      %v407 = vpop.permute.xlu0 %406
      %410 = vset.pattern.permute.xlu0 0
      %411 = vperm.xlu0 %410, %v300
      %v412 = vpop.permute.xlu0 %411
      %415 = vset.pattern.permute.xlu0 0
      %416 = vperm.xlu0 %415, %v301
      %v417 = vpop.permute.xlu0 %416
      %420 = vset.pattern.permute.xlu0 0
      %421 = vperm.xlu0 %420, %v302
      %v422 = vpop.permute.xlu0 %421
      %425 = vset.pattern.permute.xlu0 0
      %426 = vperm.xlu0 %425, %v303
      %v427 = vpop.permute.xlu0 %426
      %430 = vset.pattern.permute.xlu0 0
      %431 = vperm.xlu0 %430, %v304
      %v432 = vpop.permute.xlu0 %431
      %435 = vset.pattern.permute.xlu0 0
      %436 = vperm.xlu0 %435, %v305
      %v437 = vpop.permute.xlu0 %436
      %440 = vset.pattern.permute.xlu0 0
      %441 = vperm.xlu0 %440, %v306
      %v442 = vpop.permute.xlu0 %441
      %445 = vset.pattern.permute.xlu0 0
      %446 = vperm.xlu0 %445, %v307
      %v447 = vpop.permute.xlu0 %446
      %450 = vset.pattern.permute.xlu0 0
      %451 = vperm.xlu0 %450, %v308
      %v452 = vpop.permute.xlu0 %451
      %455 = vset.pattern.permute.xlu0 0
      %456 = vperm.xlu0 %455, %v309
      %v457 = vpop.permute.xlu0 %456
      %460 = vset.pattern.permute.xlu0 0
      %461 = vperm.xlu0 %460, %v310
      %v462 = vpop.permute.xlu0 %461
      %465 = vset.pattern.permute.xlu0 0
      %466 = vperm.xlu0 %465, %v311
      %v467 = vpop.permute.xlu0 %466
      %470 = vset.pattern.permute.xlu0 0
      %471 = vperm.xlu0 %470, %v312
      %v472 = vpop.permute.xlu0 %471
      %v474 = vlaneseq
      %v475 = vshrl.u32 %v474, 7
      %v476 = vsub.s32 0, %v475
      %v477 = vrot.slane %v318, %v476
      %v478 = vmul.f32 %v322, %v477
      %v479 = vmul.f32 %v327, %v477
      %v480 = vmul.f32 %v332, %v477
      %v481 = vmul.f32 %v337, %v477
      %v482 = vmul.f32 %v342, %v477
      %v483 = vmul.f32 %v347, %v477
      %v484 = vmul.f32 %v352, %v477
      %v485 = vmul.f32 %v357, %v477
      %v486 = vmul.f32 %v362, %v477
      %v487 = vmul.f32 %v367, %v477
      %v488 = vmul.f32 %v372, %v477
      %v489 = vmul.f32 %v377, %v477
      %v490 = vmul.f32 %v382, %v477
      %v491 = vmul.f32 %v387, %v477
      %v492 = vmul.f32 %v392, %v477
      %v493 = vmul.f32 %v397, %v477
      %v494 = vmul.f32 %v402, %v477
      %v495 = vmul.f32 %v407, %v477
      %v496 = vmul.f32 %v412, %v477
      %v497 = vmul.f32 %v417, %v477
      %v498 = vmul.f32 %v422, %v477
      %v499 = vmul.f32 %v427, %v477
      %v500 = vmul.f32 %v432, %v477
      %v501 = vmul.f32 %v437, %v477
      %v502 = vmul.f32 %v442, %v477
      %v503 = vmul.f32 %v447, %v477
      %v504 = vmul.f32 %v452, %v477
      %v505 = vmul.f32 %v457, %v477
      %v506 = vmul.f32 %v462, %v477
      %v507 = vmul.f32 %v467, %v477
      %v508 = vmul.f32 %v472, %v477
      %v509 = vld [vmem:[%s1 + $0x1] sm:$0x1]
      %510 = vset.pattern.permute.xlu0 1
      %511 = vperm.xlu0 %510, %v282
      %v512 = vpop.permute.xlu0 %511
      %514 = vset.pattern.permute.xlu0 1
      %515 = vperm.xlu0 %514, %v283
      %v516 = vpop.permute.xlu0 %515
      %518 = vset.pattern.permute.xlu0 1
      %519 = vperm.xlu0 %518, %v284
      %v520 = vpop.permute.xlu0 %519
      %522 = vset.pattern.permute.xlu0 1
      %523 = vperm.xlu0 %522, %v285
      %v524 = vpop.permute.xlu0 %523
      %526 = vset.pattern.permute.xlu0 1
      %527 = vperm.xlu0 %526, %v286
      %v528 = vpop.permute.xlu0 %527
      %530 = vset.pattern.permute.xlu0 1
      %531 = vperm.xlu0 %530, %v287
      %v532 = vpop.permute.xlu0 %531
      %534 = vset.pattern.permute.xlu0 1
      %535 = vperm.xlu0 %534, %v288
      %v536 = vpop.permute.xlu0 %535
      %538 = vset.pattern.permute.xlu0 1
      %539 = vperm.xlu0 %538, %v289
      %v540 = vpop.permute.xlu0 %539
      %542 = vset.pattern.permute.xlu0 1
      %543 = vperm.xlu0 %542, %v290
      %v544 = vpop.permute.xlu0 %543
      %546 = vset.pattern.permute.xlu0 1
      %547 = vperm.xlu0 %546, %v291
      %v548 = vpop.permute.xlu0 %547
      %550 = vset.pattern.permute.xlu0 1
      %551 = vperm.xlu0 %550, %v292
      %v552 = vpop.permute.xlu0 %551
      %554 = vset.pattern.permute.xlu0 1
      %555 = vperm.xlu0 %554, %v293
      %v556 = vpop.permute.xlu0 %555
      %558 = vset.pattern.permute.xlu0 1
      %559 = vperm.xlu0 %558, %v294
      %v560 = vpop.permute.xlu0 %559
      %562 = vset.pattern.permute.xlu0 1
      %563 = vperm.xlu0 %562, %v295
      %v564 = vpop.permute.xlu0 %563
      %566 = vset.pattern.permute.xlu0 1
      %567 = vperm.xlu0 %566, %v296
      %v568 = vpop.permute.xlu0 %567
      %570 = vset.pattern.permute.xlu0 1
      %571 = vperm.xlu0 %570, %v297
      %v572 = vpop.permute.xlu0 %571
      %574 = vset.pattern.permute.xlu0 1
      %575 = vperm.xlu0 %574, %v298
      %v576 = vpop.permute.xlu0 %575
      %578 = vset.pattern.permute.xlu0 1
      %579 = vperm.xlu0 %578, %v299
      %v580 = vpop.permute.xlu0 %579
      %582 = vset.pattern.permute.xlu0 1
      %583 = vperm.xlu0 %582, %v300
      %v584 = vpop.permute.xlu0 %583
      %586 = vset.pattern.permute.xlu0 1
      %587 = vperm.xlu0 %586, %v301
      %v588 = vpop.permute.xlu0 %587
      %590 = vset.pattern.permute.xlu0 1
      %591 = vperm.xlu0 %590, %v302
      %v592 = vpop.permute.xlu0 %591
      %594 = vset.pattern.permute.xlu0 1
      %595 = vperm.xlu0 %594, %v303
      %v596 = vpop.permute.xlu0 %595
      %598 = vset.pattern.permute.xlu0 1
      %599 = vperm.xlu0 %598, %v304
      %v600 = vpop.permute.xlu0 %599
      %602 = vset.pattern.permute.xlu0 1
      %603 = vperm.xlu0 %602, %v305
      %v604 = vpop.permute.xlu0 %603
      %606 = vset.pattern.permute.xlu0 1
      %607 = vperm.xlu0 %606, %v306
      %v608 = vpop.permute.xlu0 %607
      %610 = vset.pattern.permute.xlu0 1
      %611 = vperm.xlu0 %610, %v307
      %v612 = vpop.permute.xlu0 %611
      %614 = vset.pattern.permute.xlu0 1
      %615 = vperm.xlu0 %614, %v308
      %v616 = vpop.permute.xlu0 %615
      %618 = vset.pattern.permute.xlu0 1
      %619 = vperm.xlu0 %618, %v309
      %v620 = vpop.permute.xlu0 %619
      %622 = vset.pattern.permute.xlu0 1
      %623 = vperm.xlu0 %622, %v310
      %v624 = vpop.permute.xlu0 %623
      %626 = vset.pattern.permute.xlu0 1
      %627 = vperm.xlu0 %626, %v311
      %v628 = vpop.permute.xlu0 %627
      %630 = vset.pattern.permute.xlu0 1
      %631 = vperm.xlu0 %630, %v312
      %v632 = vpop.permute.xlu0 %631
      %v634 = vlaneseq
      %v635 = vshrl.u32 %v634, 7
      %v636 = vsub.s32 0, %v635
      %v637 = vrot.slane %v509, %v636
      %v638 = vmul.f32 %v512, %v637
      %v639 = vmul.f32 %v516, %v637
      %v640 = vmul.f32 %v520, %v637
      %v641 = vmul.f32 %v524, %v637
      %v642 = vmul.f32 %v528, %v637
      %v643 = vmul.f32 %v532, %v637
      %v644 = vmul.f32 %v536, %v637
      %v645 = vmul.f32 %v540, %v637
      %v646 = vmul.f32 %v544, %v637
      %v647 = vmul.f32 %v548, %v637
      %v648 = vmul.f32 %v552, %v637
      %v649 = vmul.f32 %v556, %v637
      %v650 = vmul.f32 %v560, %v637
      %v651 = vmul.f32 %v564, %v637
      %v652 = vmul.f32 %v568, %v637
      %v653 = vmul.f32 %v572, %v637
      %v654 = vmul.f32 %v576, %v637
      %v655 = vmul.f32 %v580, %v637
      %v656 = vmul.f32 %v584, %v637
      %v657 = vmul.f32 %v588, %v637
      %v658 = vmul.f32 %v592, %v637
      %v659 = vmul.f32 %v596, %v637
      %v660 = vmul.f32 %v600, %v637
      %v661 = vmul.f32 %v604, %v637
      %v662 = vmul.f32 %v608, %v637
      %v663 = vmul.f32 %v612, %v637
      %v664 = vmul.f32 %v616, %v637
      %v665 = vmul.f32 %v620, %v637
      %v666 = vmul.f32 %v624, %v637
      %v667 = vmul.f32 %v628, %v637
      %v668 = vmul.f32 %v632, %v637
      %v669 = vadd.f32 %v478, %v638
      %v670 = vadd.f32 %v479, %v639
      %v671 = vadd.f32 %v480, %v640
      %v672 = vadd.f32 %v481, %v641
      %v673 = vadd.f32 %v482, %v642
      %v674 = vadd.f32 %v483, %v643
      %v675 = vadd.f32 %v484, %v644
      %v676 = vadd.f32 %v485, %v645
      %v677 = vadd.f32 %v486, %v646
      %v678 = vadd.f32 %v487, %v647
      %v679 = vadd.f32 %v488, %v648
      %v680 = vadd.f32 %v489, %v649
      %v681 = vadd.f32 %v490, %v650
      %v682 = vadd.f32 %v491, %v651
      %v683 = vadd.f32 %v492, %v652
      %v684 = vadd.f32 %v493, %v653
      %v685 = vadd.f32 %v494, %v654
      %v686 = vadd.f32 %v495, %v655
      %v687 = vadd.f32 %v496, %v656
      %v688 = vadd.f32 %v497, %v657
      %v689 = vadd.f32 %v498, %v658
      %v690 = vadd.f32 %v499, %v659
      %v691 = vadd.f32 %v500, %v660
      %v692 = vadd.f32 %v501, %v661
      %v693 = vadd.f32 %v502, %v662
      %v694 = vadd.f32 %v503, %v663
      %v695 = vadd.f32 %v504, %v664
      %v696 = vadd.f32 %v505, %v665
      %v697 = vadd.f32 %v506, %v666
      %v698 = vadd.f32 %v507, %v667
      %v699 = vadd.f32 %v508, %v668
      %v700 = vlaneseq
      %v701 = vshrl.u32 %v700, 7
      %v702 = vsub.s32 0, %v701
      %v703 = vrot.slane %v313, %v702
      %v704 = vadd.f32 %v669, %v703
      %v705 = vadd.f32 %v670, %v703
      %v706 = vadd.f32 %v671, %v703
      %v707 = vadd.f32 %v672, %v703
      %v708 = vadd.f32 %v673, %v703
      %v709 = vadd.f32 %v674, %v703
      %v710 = vadd.f32 %v675, %v703
      %v711 = vadd.f32 %v676, %v703
      %v712 = vadd.f32 %v677, %v703
      %v713 = vadd.f32 %v678, %v703
      %v714 = vadd.f32 %v679, %v703
      %v715 = vadd.f32 %v680, %v703
      %v716 = vadd.f32 %v681, %v703
      %v717 = vadd.f32 %v682, %v703
      %v718 = vadd.f32 %v683, %v703
      %v719 = vadd.f32 %v684, %v703
      %v720 = vadd.f32 %v685, %v703
      %v721 = vadd.f32 %v686, %v703
      %v722 = vadd.f32 %v687, %v703
      %v723 = vadd.f32 %v688, %v703
      %v724 = vadd.f32 %v689, %v703
      %v725 = vadd.f32 %v690, %v703
      %v726 = vadd.f32 %v691, %v703
      %v727 = vadd.f32 %v692, %v703
      %v728 = vadd.f32 %v693, %v703
      %v729 = vadd.f32 %v694, %v703
      %v730 = vadd.f32 %v695, %v703
      %v731 = vadd.f32 %v696, %v703
      %v732 = vadd.f32 %v697, %v703
      %v733 = vadd.f32 %v698, %v703
      %v734 = vadd.f32 %v699, %v703
      %v735 = vtanh.pop %v704
      %v736 = vtanh.pop %v705
      %v737 = vtanh.pop %v706
      %v738 = vtanh.pop %v707
      %v739 = vtanh.pop %v708
      %v740 = vtanh.pop %v709
      %v741 = vtanh.pop %v710
      %v742 = vtanh.pop %v711
      %v743 = vtanh.pop %v712
      %v744 = vtanh.pop %v713
      %v745 = vtanh.pop %v714
      %v746 = vtanh.pop %v715
      %v747 = vtanh.pop %v716
      %v748 = vtanh.pop %v717
      %v749 = vtanh.pop %v718
      %v750 = vtanh.pop %v719
      %v751 = vtanh.pop %v720
      %v752 = vtanh.pop %v721
      %v753 = vtanh.pop %v722
      %v754 = vtanh.pop %v723
      %v755 = vtanh.pop %v724
      %v756 = vtanh.pop %v725
      %v757 = vtanh.pop %v726
      %v758 = vtanh.pop %v727
      %v759 = vtanh.pop %v728
      %v760 = vtanh.pop %v729
      %v761 = vtanh.pop %v730
      %v762 = vtanh.pop %v731
      %v763 = vtanh.pop %v732
      %v764 = vtanh.pop %v733
      %v765 = vtanh.pop %v734
      %v766 = vld [vmem:[%s2] sm:$0xff]
      %v767 = vld [vmem:[%s2 + $0x8] sm:$0xff]
      %v768 = vld [vmem:[%s2 + $0x10] sm:$0xff]
      %v769 = vld [vmem:[%s2 + $0x18] sm:$0xff]
      %v770 = vld [vmem:[%s2 + $0x20] sm:$0xff]
      %v771 = vld [vmem:[%s2 + $0x28] sm:$0xff]
      %v772 = vld [vmem:[%s2 + $0x30] sm:$0xff]
      %v773 = vld [vmem:[%s2 + $0x38] sm:$0xff]
      %v774 = vld [vmem:[%s2 + $0x40] sm:$0xff]
      %v775 = vld [vmem:[%s2 + $0x48] sm:$0xff]
      %v776 = vld [vmem:[%s2 + $0x50] sm:$0xff]
      %v777 = vld [vmem:[%s2 + $0x58] sm:$0xff]
      %v778 = vld [vmem:[%s2 + $0x60] sm:$0xff]
      %v779 = vld [vmem:[%s2 + $0x68] sm:$0xff]
      %v780 = vld [vmem:[%s2 + $0x70] sm:$0xff]
      %v781 = vld [vmem:[%s2 + $0x78] sm:$0xff]
      %v782 = vlaneseq
      %v783 = vshrl.u32 %v782, 7
      %v784 = vsub.s32 0, %v783
      %v785 = vrot.slane %v314, %v784
      %786 = vmatprep.subr.mxu0 0.0
      %787 = vmatpush1.msra.mxu0 %v766
      %788 = vmatprep.subr.mxu0 0.0
      %789 = vmatpush1.msra.mxu0 %v767
      %790 = vmatprep.subr.mxu0 0.0
      %791 = vmatpush1.msra.mxu0 %v768
      %792 = vmatprep.subr.mxu0 0.0
      %793 = vmatpush1.msra.mxu0 %v769
      %794 = vmatprep.subr.mxu0 0.0
      %795 = vmatpush1.msra.mxu0 %v770
      %796 = vmatprep.subr.mxu0 0.0
      %797 = vmatpush1.msra.mxu0 %v771
      %798 = vmatprep.subr.mxu0 0.0
      %799 = vmatpush1.msra.mxu0 %v772
      %800 = vmatprep.subr.mxu0 0.0
      %801 = vmatpush1.msra.mxu0 %v773
      %802 = vmatprep.subr.mxu0 0.0
      %803 = vmatpush1.msra.mxu0 %v774
      %804 = vmatprep.subr.mxu0 0.0
      %805 = vmatpush1.msra.mxu0 %v775
      %806 = vmatprep.subr.mxu0 0.0
      %807 = vmatpush1.msra.mxu0 %v776
      %808 = vmatprep.subr.mxu0 0.0
      %809 = vmatpush1.msra.mxu0 %v777
      %810 = vmatprep.subr.mxu0 0.0
      %811 = vmatpush1.msra.mxu0 %v778
      %812 = vmatprep.subr.mxu0 0.0
      %813 = vmatpush1.msra.mxu0 %v779
      %814 = vmatprep.subr.mxu0 0.0
      %815 = vmatpush1.msra.mxu0 %v780
      %816 = vmatprep.subr.mxu0 0.0
      %817 = vmatpush1.msra.mxu0 %v781
      %818 = vmatprep.subr.mxu0 0.0
      %819 = vmatpush1.msra.mxu0 0.0
      %820 = vmatprep.subr.mxu0 0.0
      %821 = vmatpush1.msra.mxu0 0.0
      %822 = vmatprep.subr.mxu0 0.0
      %823 = vmatpush1.msra.mxu0 0.0
      %824 = vmatprep.subr.mxu0 0.0
      %825 = vmatpush1.msra.mxu0 0.0
      %826 = vmatprep.subr.mxu0 0.0
      %827 = vmatpush1.msra.mxu0 0.0
      %828 = vmatprep.subr.mxu0 0.0
      %829 = vmatpush1.msra.mxu0 0.0
      %830 = vmatprep.subr.mxu0 0.0
      %831 = vmatpush1.msra.mxu0 0.0
      %832 = vmatprep.subr.mxu0 0.0
      %833 = vmatpush1.msra.mxu0 0.0
      %834 = vmatprep.subr.mxu0 0.0
      %835 = vmatpush1.msra.mxu0 0.0
      %836 = vmatprep.subr.mxu0 0.0
      %837 = vmatpush1.msra.mxu0 0.0
      %838 = vmatprep.subr.mxu0 0.0
      %839 = vmatpush1.msra.mxu0 0.0
      %840 = vmatprep.subr.mxu0 0.0
      %841 = vmatpush1.msra.mxu0 0.0
      %842 = vmatprep.subr.mxu0 0.0
      %843 = vmatpush1.msra.mxu0 0.0
      %844 = vmatprep.subr.mxu0 0.0
      %845 = vmatpush1.msra.mxu0 0.0
      %846 = vmatprep.subr.mxu0 0.0
      %847 = vmatpush1.msra.mxu0 0.0
      %848 = vmatprep.subr.mxu0 0.0
      %849 = vmatpush1.msra.mxu0 0.0
      %850 = vmatprep.mubr.f32.mxu0 0.0
      %851 = vmatmul.mubr.f32.gmra.mrb[0].mxu0 %v735
      %v852 = vpop.f32.mrb[0].mxu0
      %v853 = vadd.f32 %v785, %v852
      %v854 = vpop.f32.mrb[0].mxu0
      %855 = vmatprep.mubr.f32.mxu0 0.0
      %856 = vmatmul.mubr.f32.gmra.mrb[0].mxu0 %v736
      %v857 = vpop.f32.mrb[0].mxu0
      %v858 = vadd.f32 %v785, %v857
      %v859 = vpop.f32.mrb[0].mxu0
      %860 = vmatprep.mubr.f32.mxu0 0.0
      %861 = vmatmul.mubr.f32.gmra.mrb[0].mxu0 %v737
      %v862 = vpop.f32.mrb[0].mxu0
      %v863 = vadd.f32 %v785, %v862
      %v864 = vpop.f32.mrb[0].mxu0
      %865 = vmatprep.mubr.f32.mxu0 0.0
      %866 = vmatmul.mubr.f32.gmra.mrb[0].mxu0 %v738
      %v867 = vpop.f32.mrb[0].mxu0
      %v868 = vadd.f32 %v785, %v867
      %v869 = vpop.f32.mrb[0].mxu0
      %870 = vmatprep.mubr.f32.mxu0 0.0
      %871 = vmatmul.mubr.f32.gmra.mrb[0].mxu0 %v739
      %v872 = vpop.f32.mrb[0].mxu0
      %v873 = vadd.f32 %v785, %v872
      %v874 = vpop.f32.mrb[0].mxu0
      %875 = vmatprep.mubr.f32.mxu0 0.0
      %876 = vmatmul.mubr.f32.gmra.mrb[0].mxu0 %v740
      %v877 = vpop.f32.mrb[0].mxu0
      %v878 = vadd.f32 %v785, %v877
      %v879 = vpop.f32.mrb[0].mxu0
      %880 = vmatprep.mubr.f32.mxu0 0.0
      %881 = vmatmul.mubr.f32.gmra.mrb[0].mxu0 %v741
      %v882 = vpop.f32.mrb[0].mxu0
      %v883 = vadd.f32 %v785, %v882
      %v884 = vpop.f32.mrb[0].mxu0
      %885 = vmatprep.mubr.f32.mxu0 0.0
      %886 = vmatmul.mubr.f32.gmra.mrb[0].mxu0 %v742
      %v887 = vpop.f32.mrb[0].mxu0
      %v888 = vadd.f32 %v785, %v887
      %v889 = vpop.f32.mrb[0].mxu0
      %890 = vmatprep.mubr.f32.mxu0 0.0
      %891 = vmatmul.mubr.f32.gmra.mrb[0].mxu0 %v743
      %v892 = vpop.f32.mrb[0].mxu0
      %v893 = vadd.f32 %v785, %v892
      %v894 = vpop.f32.mrb[0].mxu0
      %895 = vmatprep.mubr.f32.mxu0 0.0
      %896 = vmatmul.mubr.f32.gmra.mrb[0].mxu0 %v744
      %v897 = vpop.f32.mrb[0].mxu0
      %v898 = vadd.f32 %v785, %v897
      %v899 = vpop.f32.mrb[0].mxu0
      %900 = vmatprep.mubr.f32.mxu0 0.0
      %901 = vmatmul.mubr.f32.gmra.mrb[0].mxu0 %v745
      %v902 = vpop.f32.mrb[0].mxu0
      %v903 = vadd.f32 %v785, %v902
      %v904 = vpop.f32.mrb[0].mxu0
      %905 = vmatprep.mubr.f32.mxu0 0.0
      %906 = vmatmul.mubr.f32.gmra.mrb[0].mxu0 %v746
      %v907 = vpop.f32.mrb[0].mxu0
      %v908 = vadd.f32 %v785, %v907
      %v909 = vpop.f32.mrb[0].mxu0
      %910 = vmatprep.mubr.f32.mxu0 0.0
      %911 = vmatmul.mubr.f32.gmra.mrb[0].mxu0 %v747
      %v912 = vpop.f32.mrb[0].mxu0
      %v913 = vadd.f32 %v785, %v912
      %v914 = vpop.f32.mrb[0].mxu0
      %915 = vmatprep.mubr.f32.mxu0 0.0
      %916 = vmatmul.mubr.f32.gmra.mrb[0].mxu0 %v748
      %v917 = vpop.f32.mrb[0].mxu0
      %v918 = vadd.f32 %v785, %v917
      %v919 = vpop.f32.mrb[0].mxu0
      %920 = vmatprep.mubr.f32.mxu0 0.0
      %921 = vmatmul.mubr.f32.gmra.mrb[0].mxu0 %v749
      %v922 = vpop.f32.mrb[0].mxu0
      %v923 = vadd.f32 %v785, %v922
      %v924 = vpop.f32.mrb[0].mxu0
      %925 = vmatprep.mubr.f32.mxu0 0.0
      %926 = vmatmul.mubr.f32.gmra.mrb[0].mxu0 %v750
      %v927 = vpop.f32.mrb[0].mxu0
      %v928 = vadd.f32 %v785, %v927
      %v929 = vpop.f32.mrb[0].mxu0
      %930 = vmatprep.mubr.f32.mxu0 0.0
      %931 = vmatmul.mubr.f32.gmra.mrb[0].mxu0 %v751
      %v932 = vpop.f32.mrb[0].mxu0
      %v933 = vadd.f32 %v785, %v932
      %v934 = vpop.f32.mrb[0].mxu0
      %935 = vmatprep.mubr.f32.mxu0 0.0
      %936 = vmatmul.mubr.f32.gmra.mrb[0].mxu0 %v752
      %v937 = vpop.f32.mrb[0].mxu0
      %v938 = vadd.f32 %v785, %v937
      %v939 = vpop.f32.mrb[0].mxu0
      %940 = vmatprep.mubr.f32.mxu0 0.0
      %941 = vmatmul.mubr.f32.gmra.mrb[0].mxu0 %v753
      %v942 = vpop.f32.mrb[0].mxu0
      %v943 = vadd.f32 %v785, %v942
      %v944 = vpop.f32.mrb[0].mxu0
      %945 = vmatprep.mubr.f32.mxu0 0.0
      %946 = vmatmul.mubr.f32.gmra.mrb[0].mxu0 %v754
      %v947 = vpop.f32.mrb[0].mxu0
      %v948 = vadd.f32 %v785, %v947
      %v949 = vpop.f32.mrb[0].mxu0
      %950 = vmatprep.mubr.f32.mxu0 0.0
      %951 = vmatmul.mubr.f32.gmra.mrb[0].mxu0 %v755
      %v952 = vpop.f32.mrb[0].mxu0
      %v953 = vadd.f32 %v785, %v952
      %v954 = vpop.f32.mrb[0].mxu0
      %955 = vmatprep.mubr.f32.mxu0 0.0
      %956 = vmatmul.mubr.f32.gmra.mrb[0].mxu0 %v756
      %v957 = vpop.f32.mrb[0].mxu0
      %v958 = vadd.f32 %v785, %v957
      %v959 = vpop.f32.mrb[0].mxu0
      %960 = vmatprep.mubr.f32.mxu0 0.0
      %961 = vmatmul.mubr.f32.gmra.mrb[0].mxu0 %v757
      %v962 = vpop.f32.mrb[0].mxu0
      %v963 = vadd.f32 %v785, %v962
      %v964 = vpop.f32.mrb[0].mxu0
      %965 = vmatprep.mubr.f32.mxu0 0.0
      %966 = vmatmul.mubr.f32.gmra.mrb[0].mxu0 %v758
      %v967 = vpop.f32.mrb[0].mxu0
      %v968 = vadd.f32 %v785, %v967
      %v969 = vpop.f32.mrb[0].mxu0
      %970 = vmatprep.mubr.f32.mxu0 0.0
      %971 = vmatmul.mubr.f32.gmra.mrb[0].mxu0 %v759
      %v972 = vpop.f32.mrb[0].mxu0
      %v973 = vadd.f32 %v785, %v972
      %v974 = vpop.f32.mrb[0].mxu0
      %975 = vmatprep.mubr.f32.mxu0 0.0
      %976 = vmatmul.mubr.f32.gmra.mrb[0].mxu0 %v760
      %v977 = vpop.f32.mrb[0].mxu0
      %v978 = vadd.f32 %v785, %v977
      %v979 = vpop.f32.mrb[0].mxu0
      %980 = vmatprep.mubr.f32.mxu0 0.0
      %981 = vmatmul.mubr.f32.gmra.mrb[0].mxu0 %v761
      %v982 = vpop.f32.mrb[0].mxu0
      %v983 = vadd.f32 %v785, %v982
      %v984 = vpop.f32.mrb[0].mxu0
      %985 = vmatprep.mubr.f32.mxu0 0.0
      %986 = vmatmul.mubr.f32.gmra.mrb[0].mxu0 %v762
      %v987 = vpop.f32.mrb[0].mxu0
      %v988 = vadd.f32 %v785, %v987
      %v989 = vpop.f32.mrb[0].mxu0
      %990 = vmatprep.mubr.f32.mxu0 0.0
      %991 = vmatmul.mubr.f32.gmra.mrb[0].mxu0 %v763
      %v992 = vpop.f32.mrb[0].mxu0
      %v993 = vadd.f32 %v785, %v992
      %v994 = vpop.f32.mrb[0].mxu0
      %995 = vmatprep.mubr.f32.mxu0 0.0
      %996 = vmatmul.mubr.f32.gmra.mrb[0].mxu0 %v764
      %v997 = vpop.f32.mrb[0].mxu0
      %v998 = vadd.f32 %v785, %v997
      %v999 = vpop.f32.mrb[0].mxu0
      %1000 = vmatprep.mubr.f32.mxu0 0.0
      %1001 = vmatmul.mubr.f32.gmra.mrb[0].mxu0 %v765
      %v1002 = vpop.f32.mrb[0].mxu0
      %v1003 = vadd.f32 %v785, %v1002
      %v1004 = vpop.f32.mrb[0].mxu0
      %1005 = vdwg.mxu0
      %v1006 = vtanh.pop %v853
      %v1007 = vtanh.pop %v858
      %v1008 = vtanh.pop %v863
      %v1009 = vtanh.pop %v868
      %v1010 = vtanh.pop %v873
      %v1011 = vtanh.pop %v878
      %v1012 = vtanh.pop %v883
      %v1013 = vtanh.pop %v888
      %v1014 = vtanh.pop %v893
      %v1015 = vtanh.pop %v898
      %v1016 = vtanh.pop %v903
      %v1017 = vtanh.pop %v908
      %v1018 = vtanh.pop %v913
      %v1019 = vtanh.pop %v918
      %v1020 = vtanh.pop %v923
      %v1021 = vtanh.pop %v928
      %v1022 = vtanh.pop %v933
      %v1023 = vtanh.pop %v938
      %v1024 = vtanh.pop %v943
      %v1025 = vtanh.pop %v948
      %v1026 = vtanh.pop %v953
      %v1027 = vtanh.pop %v958
      %v1028 = vtanh.pop %v963
      %v1029 = vtanh.pop %v968
      %v1030 = vtanh.pop %v973
      %v1031 = vtanh.pop %v978
      %v1032 = vtanh.pop %v983
      %v1033 = vtanh.pop %v988
      %v1034 = vtanh.pop %v993
      %v1035 = vtanh.pop %v998
      %v1036 = vtanh.pop %v1003
      %v1037 = vld [vmem:[%s3] sm:$0xff]
      %v1038 = vld [vmem:[%s3 + $0x8] sm:$0xff]
      %v1039 = vld [vmem:[%s3 + $0x10] sm:$0xff]
      %v1040 = vld [vmem:[%s3 + $0x18] sm:$0xff]
      %v1041 = vld [vmem:[%s3 + $0x20] sm:$0xff]
      %v1042 = vld [vmem:[%s3 + $0x28] sm:$0xff]
      %v1043 = vld [vmem:[%s3 + $0x30] sm:$0xff]
      %v1044 = vld [vmem:[%s3 + $0x38] sm:$0xff]
      %v1045 = vld [vmem:[%s3 + $0x40] sm:$0xff]
      %v1046 = vld [vmem:[%s3 + $0x48] sm:$0xff]
      %v1047 = vld [vmem:[%s3 + $0x50] sm:$0xff]
      %v1048 = vld [vmem:[%s3 + $0x58] sm:$0xff]
      %v1049 = vld [vmem:[%s3 + $0x60] sm:$0xff]
      %v1050 = vld [vmem:[%s3 + $0x68] sm:$0xff]
      %v1051 = vld [vmem:[%s3 + $0x70] sm:$0xff]
      %v1052 = vld [vmem:[%s3 + $0x78] sm:$0xff]
      %v1053 = vlaneseq
      %v1054 = vshrl.u32 %v1053, 7
      %v1055 = vsub.s32 0, %v1054
      %v1056 = vrot.slane %v315, %v1055
      %1057 = vmatprep.subr.mxu0 0.0
      %1058 = vmatpush1.msra.mxu0 %v1037
      %1059 = vmatprep.subr.mxu0 0.0
      %1060 = vmatpush1.msra.mxu0 %v1038
      %1061 = vmatprep.subr.mxu0 0.0
      %1062 = vmatpush1.msra.mxu0 %v1039
      %1063 = vmatprep.subr.mxu0 0.0
      %1064 = vmatpush1.msra.mxu0 %v1040
      %1065 = vmatprep.subr.mxu0 0.0
      %1066 = vmatpush1.msra.mxu0 %v1041
      %1067 = vmatprep.subr.mxu0 0.0
      %1068 = vmatpush1.msra.mxu0 %v1042
      %1069 = vmatprep.subr.mxu0 0.0
      %1070 = vmatpush1.msra.mxu0 %v1043
      %1071 = vmatprep.subr.mxu0 0.0
      %1072 = vmatpush1.msra.mxu0 %v1044
      %1073 = vmatprep.subr.mxu0 0.0
      %1074 = vmatpush1.msra.mxu0 %v1045
      %1075 = vmatprep.subr.mxu0 0.0
      %1076 = vmatpush1.msra.mxu0 %v1046
      %1077 = vmatprep.subr.mxu0 0.0
      %1078 = vmatpush1.msra.mxu0 %v1047
      %1079 = vmatprep.subr.mxu0 0.0
      %1080 = vmatpush1.msra.mxu0 %v1048
      %1081 = vmatprep.subr.mxu0 0.0
      %1082 = vmatpush1.msra.mxu0 %v1049
      %1083 = vmatprep.subr.mxu0 0.0
      %1084 = vmatpush1.msra.mxu0 %v1050
      %1085 = vmatprep.subr.mxu0 0.0
      %1086 = vmatpush1.msra.mxu0 %v1051
      %1087 = vmatprep.subr.mxu0 0.0
      %1088 = vmatpush1.msra.mxu0 %v1052
      %1089 = vmatprep.subr.mxu0 0.0
      %1090 = vmatpush1.msra.mxu0 0.0
      %1091 = vmatprep.subr.mxu0 0.0
      %1092 = vmatpush1.msra.mxu0 0.0
      %1093 = vmatprep.subr.mxu0 0.0
      %1094 = vmatpush1.msra.mxu0 0.0
      %1095 = vmatprep.subr.mxu0 0.0
      %1096 = vmatpush1.msra.mxu0 0.0
      %1097 = vmatprep.subr.mxu0 0.0
      %1098 = vmatpush1.msra.mxu0 0.0
      %1099 = vmatprep.subr.mxu0 0.0
      %1100 = vmatpush1.msra.mxu0 0.0
      %1101 = vmatprep.subr.mxu0 0.0
      %1102 = vmatpush1.msra.mxu0 0.0
      %1103 = vmatprep.subr.mxu0 0.0
      %1104 = vmatpush1.msra.mxu0 0.0
      %1105 = vmatprep.subr.mxu0 0.0
      %1106 = vmatpush1.msra.mxu0 0.0
      %1107 = vmatprep.subr.mxu0 0.0
      %1108 = vmatpush1.msra.mxu0 0.0
      %1109 = vmatprep.subr.mxu0 0.0
      %1110 = vmatpush1.msra.mxu0 0.0
      %1111 = vmatprep.subr.mxu0 0.0
      %1112 = vmatpush1.msra.mxu0 0.0
      %1113 = vmatprep.subr.mxu0 0.0
      %1114 = vmatpush1.msra.mxu0 0.0
      %1115 = vmatprep.subr.mxu0 0.0
      %1116 = vmatpush1.msra.mxu0 0.0
      %1117 = vmatprep.subr.mxu0 0.0
      %1118 = vmatpush1.msra.mxu0 0.0
      %1119 = vmatprep.subr.mxu0 0.0
      %1120 = vmatpush1.msra.mxu0 0.0
      %1121 = vmatprep.mubr.f32.mxu0 0.0
      %1122 = vmatmul.mubr.f32.gmra.mrb[0].mxu0 %v1006
      %v1123 = vpop.f32.mrb[0].mxu0
      %v1124 = vadd.f32 %v1056, %v1123
      %v1125 = vpop.f32.mrb[0].mxu0
      %1126 = vmatprep.mubr.f32.mxu0 0.0
      %1127 = vmatmul.mubr.f32.gmra.mrb[0].mxu0 %v1007
      %v1128 = vpop.f32.mrb[0].mxu0
      %v1129 = vadd.f32 %v1056, %v1128
      %v1130 = vpop.f32.mrb[0].mxu0
      %1131 = vmatprep.mubr.f32.mxu0 0.0
      %1132 = vmatmul.mubr.f32.gmra.mrb[0].mxu0 %v1008
      %v1133 = vpop.f32.mrb[0].mxu0
      %v1134 = vadd.f32 %v1056, %v1133
      %v1135 = vpop.f32.mrb[0].mxu0
      %1136 = vmatprep.mubr.f32.mxu0 0.0
      %1137 = vmatmul.mubr.f32.gmra.mrb[0].mxu0 %v1009
      %v1138 = vpop.f32.mrb[0].mxu0
      %v1139 = vadd.f32 %v1056, %v1138
      %v1140 = vpop.f32.mrb[0].mxu0
      %1141 = vmatprep.mubr.f32.mxu0 0.0
      %1142 = vmatmul.mubr.f32.gmra.mrb[0].mxu0 %v1010
      %v1143 = vpop.f32.mrb[0].mxu0
      %v1144 = vadd.f32 %v1056, %v1143
      %v1145 = vpop.f32.mrb[0].mxu0
      %1146 = vmatprep.mubr.f32.mxu0 0.0
      %1147 = vmatmul.mubr.f32.gmra.mrb[0].mxu0 %v1011
      %v1148 = vpop.f32.mrb[0].mxu0
      %v1149 = vadd.f32 %v1056, %v1148
      %v1150 = vpop.f32.mrb[0].mxu0
      %1151 = vmatprep.mubr.f32.mxu0 0.0
      %1152 = vmatmul.mubr.f32.gmra.mrb[0].mxu0 %v1012
      %v1153 = vpop.f32.mrb[0].mxu0
      %v1154 = vadd.f32 %v1056, %v1153
      %v1155 = vpop.f32.mrb[0].mxu0
      %1156 = vmatprep.mubr.f32.mxu0 0.0
      %1157 = vmatmul.mubr.f32.gmra.mrb[0].mxu0 %v1013
      %v1158 = vpop.f32.mrb[0].mxu0
      %v1159 = vadd.f32 %v1056, %v1158
      %v1160 = vpop.f32.mrb[0].mxu0
      %1161 = vmatprep.mubr.f32.mxu0 0.0
      %1162 = vmatmul.mubr.f32.gmra.mrb[0].mxu0 %v1014
      %v1163 = vpop.f32.mrb[0].mxu0
      %v1164 = vadd.f32 %v1056, %v1163
      %v1165 = vpop.f32.mrb[0].mxu0
      %1166 = vmatprep.mubr.f32.mxu0 0.0
      %1167 = vmatmul.mubr.f32.gmra.mrb[0].mxu0 %v1015
      %v1168 = vpop.f32.mrb[0].mxu0
      %v1169 = vadd.f32 %v1056, %v1168
      %v1170 = vpop.f32.mrb[0].mxu0
      %1171 = vmatprep.mubr.f32.mxu0 0.0
      %1172 = vmatmul.mubr.f32.gmra.mrb[0].mxu0 %v1016
      %v1173 = vpop.f32.mrb[0].mxu0
      %v1174 = vadd.f32 %v1056, %v1173
      %v1175 = vpop.f32.mrb[0].mxu0
      %1176 = vmatprep.mubr.f32.mxu0 0.0
      %1177 = vmatmul.mubr.f32.gmra.mrb[0].mxu0 %v1017
      %v1178 = vpop.f32.mrb[0].mxu0
      %v1179 = vadd.f32 %v1056, %v1178
      %v1180 = vpop.f32.mrb[0].mxu0
      %1181 = vmatprep.mubr.f32.mxu0 0.0
      %1182 = vmatmul.mubr.f32.gmra.mrb[0].mxu0 %v1018
      %v1183 = vpop.f32.mrb[0].mxu0
      %v1184 = vadd.f32 %v1056, %v1183
      %v1185 = vpop.f32.mrb[0].mxu0
      %1186 = vmatprep.mubr.f32.mxu0 0.0
      %1187 = vmatmul.mubr.f32.gmra.mrb[0].mxu0 %v1019
      %v1188 = vpop.f32.mrb[0].mxu0
      %v1189 = vadd.f32 %v1056, %v1188
      %v1190 = vpop.f32.mrb[0].mxu0
      %1191 = vmatprep.mubr.f32.mxu0 0.0
      %1192 = vmatmul.mubr.f32.gmra.mrb[0].mxu0 %v1020
      %v1193 = vpop.f32.mrb[0].mxu0
      %v1194 = vadd.f32 %v1056, %v1193
      %v1195 = vpop.f32.mrb[0].mxu0
      %1196 = vmatprep.mubr.f32.mxu0 0.0
      %1197 = vmatmul.mubr.f32.gmra.mrb[0].mxu0 %v1021
      %v1198 = vpop.f32.mrb[0].mxu0
      %v1199 = vadd.f32 %v1056, %v1198
      %v1200 = vpop.f32.mrb[0].mxu0
      %1201 = vmatprep.mubr.f32.mxu0 0.0
      %1202 = vmatmul.mubr.f32.gmra.mrb[0].mxu0 %v1022
      %v1203 = vpop.f32.mrb[0].mxu0
      %v1204 = vadd.f32 %v1056, %v1203
      %v1205 = vpop.f32.mrb[0].mxu0
      %1206 = vmatprep.mubr.f32.mxu0 0.0
      %1207 = vmatmul.mubr.f32.gmra.mrb[0].mxu0 %v1023
      %v1208 = vpop.f32.mrb[0].mxu0
      %v1209 = vadd.f32 %v1056, %v1208
      %v1210 = vpop.f32.mrb[0].mxu0
      %1211 = vmatprep.mubr.f32.mxu0 0.0
      %1212 = vmatmul.mubr.f32.gmra.mrb[0].mxu0 %v1024
      %v1213 = vpop.f32.mrb[0].mxu0
      %v1214 = vadd.f32 %v1056, %v1213
      %v1215 = vpop.f32.mrb[0].mxu0
      %1216 = vmatprep.mubr.f32.mxu0 0.0
      %1217 = vmatmul.mubr.f32.gmra.mrb[0].mxu0 %v1025
      %v1218 = vpop.f32.mrb[0].mxu0
      %v1219 = vadd.f32 %v1056, %v1218
      %v1220 = vpop.f32.mrb[0].mxu0
      %1221 = vmatprep.mubr.f32.mxu0 0.0
      %1222 = vmatmul.mubr.f32.gmra.mrb[0].mxu0 %v1026
      %v1223 = vpop.f32.mrb[0].mxu0
      %v1224 = vadd.f32 %v1056, %v1223
      %v1225 = vpop.f32.mrb[0].mxu0
      %1226 = vmatprep.mubr.f32.mxu0 0.0
      %1227 = vmatmul.mubr.f32.gmra.mrb[0].mxu0 %v1027
      %v1228 = vpop.f32.mrb[0].mxu0
      %v1229 = vadd.f32 %v1056, %v1228
      %v1230 = vpop.f32.mrb[0].mxu0
      %1231 = vmatprep.mubr.f32.mxu0 0.0
      %1232 = vmatmul.mubr.f32.gmra.mrb[0].mxu0 %v1028
      %v1233 = vpop.f32.mrb[0].mxu0
      %v1234 = vadd.f32 %v1056, %v1233
      %v1235 = vpop.f32.mrb[0].mxu0
      %1236 = vmatprep.mubr.f32.mxu0 0.0
      %1237 = vmatmul.mubr.f32.gmra.mrb[0].mxu0 %v1029
      %v1238 = vpop.f32.mrb[0].mxu0
      %v1239 = vadd.f32 %v1056, %v1238
      %v1240 = vpop.f32.mrb[0].mxu0
      %1241 = vmatprep.mubr.f32.mxu0 0.0
      %1242 = vmatmul.mubr.f32.gmra.mrb[0].mxu0 %v1030
      %v1243 = vpop.f32.mrb[0].mxu0
      %v1244 = vadd.f32 %v1056, %v1243
      %v1245 = vpop.f32.mrb[0].mxu0
      %1246 = vmatprep.mubr.f32.mxu0 0.0
      %1247 = vmatmul.mubr.f32.gmra.mrb[0].mxu0 %v1031
      %v1248 = vpop.f32.mrb[0].mxu0
      %v1249 = vadd.f32 %v1056, %v1248
      %v1250 = vpop.f32.mrb[0].mxu0
      %1251 = vmatprep.mubr.f32.mxu0 0.0
      %1252 = vmatmul.mubr.f32.gmra.mrb[0].mxu0 %v1032
      %v1253 = vpop.f32.mrb[0].mxu0
      %v1254 = vadd.f32 %v1056, %v1253
      %v1255 = vpop.f32.mrb[0].mxu0
      %1256 = vmatprep.mubr.f32.mxu0 0.0
      %1257 = vmatmul.mubr.f32.gmra.mrb[0].mxu0 %v1033
      %v1258 = vpop.f32.mrb[0].mxu0
      %v1259 = vadd.f32 %v1056, %v1258
      %v1260 = vpop.f32.mrb[0].mxu0
      %1261 = vmatprep.mubr.f32.mxu0 0.0
      %1262 = vmatmul.mubr.f32.gmra.mrb[0].mxu0 %v1034
      %v1263 = vpop.f32.mrb[0].mxu0
      %v1264 = vadd.f32 %v1056, %v1263
      %v1265 = vpop.f32.mrb[0].mxu0
      %1266 = vmatprep.mubr.f32.mxu0 0.0
      %1267 = vmatmul.mubr.f32.gmra.mrb[0].mxu0 %v1035
      %v1268 = vpop.f32.mrb[0].mxu0
      %v1269 = vadd.f32 %v1056, %v1268
      %v1270 = vpop.f32.mrb[0].mxu0
      %1271 = vmatprep.mubr.f32.mxu0 0.0
      %1272 = vmatmul.mubr.f32.gmra.mrb[0].mxu0 %v1036
      %v1273 = vpop.f32.mrb[0].mxu0
      %v1274 = vadd.f32 %v1056, %v1273
      %v1275 = vpop.f32.mrb[0].mxu0
      %1276 = vdwg.mxu0
      %v1277 = vtanh.pop %v1124
      %v1278 = vtanh.pop %v1129
      %v1279 = vtanh.pop %v1134
      %v1280 = vtanh.pop %v1139
      %v1281 = vtanh.pop %v1144
      %v1282 = vtanh.pop %v1149
      %v1283 = vtanh.pop %v1154
      %v1284 = vtanh.pop %v1159
      %v1285 = vtanh.pop %v1164
      %v1286 = vtanh.pop %v1169
      %v1287 = vtanh.pop %v1174
      %v1288 = vtanh.pop %v1179
      %v1289 = vtanh.pop %v1184
      %v1290 = vtanh.pop %v1189
      %v1291 = vtanh.pop %v1194
      %v1292 = vtanh.pop %v1199
      %v1293 = vtanh.pop %v1204
      %v1294 = vtanh.pop %v1209
      %v1295 = vtanh.pop %v1214
      %v1296 = vtanh.pop %v1219
      %v1297 = vtanh.pop %v1224
      %v1298 = vtanh.pop %v1229
      %v1299 = vtanh.pop %v1234
      %v1300 = vtanh.pop %v1239
      %v1301 = vtanh.pop %v1244
      %v1302 = vtanh.pop %v1249
      %v1303 = vtanh.pop %v1254
      %v1304 = vtanh.pop %v1259
      %v1305 = vtanh.pop %v1264
      %v1306 = vtanh.pop %v1269
      %v1307 = vtanh.pop %v1274
      %v1308 = vld [vmem:[%s4] sm:$0xff]
      %v1309 = vld [vmem:[%s4 + $0x8] sm:$0xff]
      %v1310 = vld [vmem:[%s4 + $0x10] sm:$0xff]
      %v1311 = vld [vmem:[%s4 + $0x18] sm:$0xff]
      %v1312 = vld [vmem:[%s4 + $0x20] sm:$0xff]
      %v1313 = vld [vmem:[%s4 + $0x28] sm:$0xff]
      %v1314 = vld [vmem:[%s4 + $0x30] sm:$0xff]
      %v1315 = vld [vmem:[%s4 + $0x38] sm:$0xff]
      %v1316 = vlaneseq
      %v1317 = vshrl.u32 %v1316, 7
      %v1318 = vsub.s32 0, %v1317
      %v1319 = vrot.slane %v316, %v1318
      %vm1320 = vcmask 523264
      %v1322 = vsel %vm1320, %v1277, 0
      %v1325 = vsel %vm1320, %v1278, 0
      %v1328 = vsel %vm1320, %v1279, 0
      %v1331 = vsel %vm1320, %v1280, 0
      %v1334 = vsel %vm1320, %v1281, 0
      %v1337 = vsel %vm1320, %v1282, 0
      %v1340 = vsel %vm1320, %v1283, 0
      %v1343 = vsel %vm1320, %v1284, 0
      %v1346 = vsel %vm1320, %v1285, 0
      %v1349 = vsel %vm1320, %v1286, 0
      %v1352 = vsel %vm1320, %v1287, 0
      %v1355 = vsel %vm1320, %v1288, 0
      %v1358 = vsel %vm1320, %v1289, 0
      %v1361 = vsel %vm1320, %v1290, 0
      %v1364 = vsel %vm1320, %v1291, 0
      %v1367 = vsel %vm1320, %v1292, 0
      %v1370 = vsel %vm1320, %v1293, 0
      %v1373 = vsel %vm1320, %v1294, 0
      %v1376 = vsel %vm1320, %v1295, 0
      %v1379 = vsel %vm1320, %v1296, 0
      %v1382 = vsel %vm1320, %v1297, 0
      %v1385 = vsel %vm1320, %v1298, 0
      %v1388 = vsel %vm1320, %v1299, 0
      %v1391 = vsel %vm1320, %v1300, 0
      %v1394 = vsel %vm1320, %v1301, 0
      %v1397 = vsel %vm1320, %v1302, 0
      %v1400 = vsel %vm1320, %v1303, 0
      %v1403 = vsel %vm1320, %v1304, 0
      %v1406 = vsel %vm1320, %v1305, 0
      %v1409 = vsel %vm1320, %v1306, 0
      %v1412 = vsel %vm1320, %v1307, 0
      %1414 = vmatprep.subr.mxu0 0.0
      %1415 = vmatpush1.msra.mxu0 %v1308
      %1416 = vmatprep.subr.mxu0 0.0
      %1417 = vmatpush1.msra.mxu0 %v1309
      %1418 = vmatprep.subr.mxu0 0.0
      %1419 = vmatpush1.msra.mxu0 %v1310
      %1420 = vmatprep.subr.mxu0 0.0
      %1421 = vmatpush1.msra.mxu0 %v1311
      %1422 = vmatprep.subr.mxu0 0.0
      %1423 = vmatpush1.msra.mxu0 %v1312
      %1424 = vmatprep.subr.mxu0 0.0
      %1425 = vmatpush1.msra.mxu0 %v1313
      %1426 = vmatprep.subr.mxu0 0.0
      %1427 = vmatpush1.msra.mxu0 %v1314
      %1428 = vmatprep.subr.mxu0 0.0
      %1429 = vmatpush1.msra.mxu0 %v1315
      %1430 = vmatprep.subr.mxu0 0.0
      %1431 = vmatpush1.msra.mxu0 0.0
      %1432 = vmatprep.subr.mxu0 0.0
      %1433 = vmatpush1.msra.mxu0 0.0
      %1434 = vmatprep.subr.mxu0 0.0
      %1435 = vmatpush1.msra.mxu0 0.0
      %1436 = vmatprep.subr.mxu0 0.0
      %1437 = vmatpush1.msra.mxu0 0.0
      %1438 = vmatprep.subr.mxu0 0.0
      %1439 = vmatpush1.msra.mxu0 0.0
      %1440 = vmatprep.subr.mxu0 0.0
      %1441 = vmatpush1.msra.mxu0 0.0
      %1442 = vmatprep.subr.mxu0 0.0
      %1443 = vmatpush1.msra.mxu0 0.0
      %1444 = vmatprep.subr.mxu0 0.0
      %1445 = vmatpush1.msra.mxu0 0.0
      %1446 = vmatprep.subr.mxu0 0.0
      %1447 = vmatpush1.msra.mxu0 0.0
      %1448 = vmatprep.subr.mxu0 0.0
      %1449 = vmatpush1.msra.mxu0 0.0
      %1450 = vmatprep.subr.mxu0 0.0
      %1451 = vmatpush1.msra.mxu0 0.0
      %1452 = vmatprep.subr.mxu0 0.0
      %1453 = vmatpush1.msra.mxu0 0.0
      %1454 = vmatprep.subr.mxu0 0.0
      %1455 = vmatpush1.msra.mxu0 0.0
      %1456 = vmatprep.subr.mxu0 0.0
      %1457 = vmatpush1.msra.mxu0 0.0
      %1458 = vmatprep.subr.mxu0 0.0
      %1459 = vmatpush1.msra.mxu0 0.0
      %1460 = vmatprep.subr.mxu0 0.0
      %1461 = vmatpush1.msra.mxu0 0.0
      %1462 = vmatprep.subr.mxu0 0.0
      %1463 = vmatpush1.msra.mxu0 0.0
      %1464 = vmatprep.subr.mxu0 0.0
      %1465 = vmatpush1.msra.mxu0 0.0
      %1466 = vmatprep.subr.mxu0 0.0
      %1467 = vmatpush1.msra.mxu0 0.0
      %1468 = vmatprep.subr.mxu0 0.0
      %1469 = vmatpush1.msra.mxu0 0.0
      %1470 = vmatprep.subr.mxu0 0.0
      %1471 = vmatpush1.msra.mxu0 0.0
      %1472 = vmatprep.subr.mxu0 0.0
      %1473 = vmatpush1.msra.mxu0 0.0
      %1474 = vmatprep.subr.mxu0 0.0
      %1475 = vmatpush1.msra.mxu0 0.0
      %1476 = vmatprep.subr.mxu0 0.0
      %1477 = vmatpush1.msra.mxu0 0.0
      %1478 = vmatprep.mubr.f32.mxu0 0.0
      %1479 = vmatmul.mubr.f32.gmra.mrb[0].mxu0 %v1322
      %v1480 = vpop.f32.mrb[0].mxu0
      %v1481 = vadd.f32 %v1319, %v1480
      %v1482 = vpop.f32.mrb[0].mxu0
      %1483 = vmatprep.mubr.f32.mxu0 0.0
      %1484 = vmatmul.mubr.f32.gmra.mrb[0].mxu0 %v1325
      %v1485 = vpop.f32.mrb[0].mxu0
      %v1486 = vadd.f32 %v1319, %v1485
      %v1487 = vpop.f32.mrb[0].mxu0
      %1488 = vmatprep.mubr.f32.mxu0 0.0
      %1489 = vmatmul.mubr.f32.gmra.mrb[0].mxu0 %v1328
      %v1490 = vpop.f32.mrb[0].mxu0
      %v1491 = vadd.f32 %v1319, %v1490
      %v1492 = vpop.f32.mrb[0].mxu0
      %1493 = vmatprep.mubr.f32.mxu0 0.0
      %1494 = vmatmul.mubr.f32.gmra.mrb[0].mxu0 %v1331
      %v1495 = vpop.f32.mrb[0].mxu0
      %v1496 = vadd.f32 %v1319, %v1495
      %v1497 = vpop.f32.mrb[0].mxu0
      %1498 = vmatprep.mubr.f32.mxu0 0.0
      %1499 = vmatmul.mubr.f32.gmra.mrb[0].mxu0 %v1334
      %v1500 = vpop.f32.mrb[0].mxu0
      %v1501 = vadd.f32 %v1319, %v1500
      %v1502 = vpop.f32.mrb[0].mxu0
      %1503 = vmatprep.mubr.f32.mxu0 0.0
      %1504 = vmatmul.mubr.f32.gmra.mrb[0].mxu0 %v1337
      %v1505 = vpop.f32.mrb[0].mxu0
      %v1506 = vadd.f32 %v1319, %v1505
      %v1507 = vpop.f32.mrb[0].mxu0
      %1508 = vmatprep.mubr.f32.mxu0 0.0
      %1509 = vmatmul.mubr.f32.gmra.mrb[0].mxu0 %v1340
      %v1510 = vpop.f32.mrb[0].mxu0
      %v1511 = vadd.f32 %v1319, %v1510
      %v1512 = vpop.f32.mrb[0].mxu0
      %1513 = vmatprep.mubr.f32.mxu0 0.0
      %1514 = vmatmul.mubr.f32.gmra.mrb[0].mxu0 %v1343
      %v1515 = vpop.f32.mrb[0].mxu0
      %v1516 = vadd.f32 %v1319, %v1515
      %v1517 = vpop.f32.mrb[0].mxu0
      %1518 = vmatprep.mubr.f32.mxu0 0.0
      %1519 = vmatmul.mubr.f32.gmra.mrb[0].mxu0 %v1346
      %v1520 = vpop.f32.mrb[0].mxu0
      %v1521 = vadd.f32 %v1319, %v1520
      %v1522 = vpop.f32.mrb[0].mxu0
      %1523 = vmatprep.mubr.f32.mxu0 0.0
      %1524 = vmatmul.mubr.f32.gmra.mrb[0].mxu0 %v1349
      %v1525 = vpop.f32.mrb[0].mxu0
      %v1526 = vadd.f32 %v1319, %v1525
      %v1527 = vpop.f32.mrb[0].mxu0
      %1528 = vmatprep.mubr.f32.mxu0 0.0
      %1529 = vmatmul.mubr.f32.gmra.mrb[0].mxu0 %v1352
      %v1530 = vpop.f32.mrb[0].mxu0
      %v1531 = vadd.f32 %v1319, %v1530
      %v1532 = vpop.f32.mrb[0].mxu0
      %1533 = vmatprep.mubr.f32.mxu0 0.0
      %1534 = vmatmul.mubr.f32.gmra.mrb[0].mxu0 %v1355
      %v1535 = vpop.f32.mrb[0].mxu0
      %v1536 = vadd.f32 %v1319, %v1535
      %v1537 = vpop.f32.mrb[0].mxu0
      %1538 = vmatprep.mubr.f32.mxu0 0.0
      %1539 = vmatmul.mubr.f32.gmra.mrb[0].mxu0 %v1358
      %v1540 = vpop.f32.mrb[0].mxu0
      %v1541 = vadd.f32 %v1319, %v1540
      %v1542 = vpop.f32.mrb[0].mxu0
      %1543 = vmatprep.mubr.f32.mxu0 0.0
      %1544 = vmatmul.mubr.f32.gmra.mrb[0].mxu0 %v1361
      %v1545 = vpop.f32.mrb[0].mxu0
      %v1546 = vadd.f32 %v1319, %v1545
      %v1547 = vpop.f32.mrb[0].mxu0
      %1548 = vmatprep.mubr.f32.mxu0 0.0
      %1549 = vmatmul.mubr.f32.gmra.mrb[0].mxu0 %v1364
      %v1550 = vpop.f32.mrb[0].mxu0
      %v1551 = vadd.f32 %v1319, %v1550
      %v1552 = vpop.f32.mrb[0].mxu0
      %1553 = vmatprep.mubr.f32.mxu0 0.0
      %1554 = vmatmul.mubr.f32.gmra.mrb[0].mxu0 %v1367
      %v1555 = vpop.f32.mrb[0].mxu0
      %v1556 = vadd.f32 %v1319, %v1555
      %v1557 = vpop.f32.mrb[0].mxu0
      %1558 = vmatprep.mubr.f32.mxu0 0.0
      %1559 = vmatmul.mubr.f32.gmra.mrb[0].mxu0 %v1370
      %v1560 = vpop.f32.mrb[0].mxu0
      %v1561 = vadd.f32 %v1319, %v1560
      %v1562 = vpop.f32.mrb[0].mxu0
      %1563 = vmatprep.mubr.f32.mxu0 0.0
      %1564 = vmatmul.mubr.f32.gmra.mrb[0].mxu0 %v1373
      %v1565 = vpop.f32.mrb[0].mxu0
      %v1566 = vadd.f32 %v1319, %v1565
      %v1567 = vpop.f32.mrb[0].mxu0
      %1568 = vmatprep.mubr.f32.mxu0 0.0
      %1569 = vmatmul.mubr.f32.gmra.mrb[0].mxu0 %v1376
      %v1570 = vpop.f32.mrb[0].mxu0
      %v1571 = vadd.f32 %v1319, %v1570
      %v1572 = vpop.f32.mrb[0].mxu0
      %1573 = vmatprep.mubr.f32.mxu0 0.0
      %1574 = vmatmul.mubr.f32.gmra.mrb[0].mxu0 %v1379
      %v1575 = vpop.f32.mrb[0].mxu0
      %v1576 = vadd.f32 %v1319, %v1575
      %v1577 = vpop.f32.mrb[0].mxu0
      %1578 = vmatprep.mubr.f32.mxu0 0.0
      %1579 = vmatmul.mubr.f32.gmra.mrb[0].mxu0 %v1382
      %v1580 = vpop.f32.mrb[0].mxu0
      %v1581 = vadd.f32 %v1319, %v1580
      %v1582 = vpop.f32.mrb[0].mxu0
      %1583 = vmatprep.mubr.f32.mxu0 0.0
      %1584 = vmatmul.mubr.f32.gmra.mrb[0].mxu0 %v1385
      %v1585 = vpop.f32.mrb[0].mxu0
      %v1586 = vadd.f32 %v1319, %v1585
      %v1587 = vpop.f32.mrb[0].mxu0
      %1588 = vmatprep.mubr.f32.mxu0 0.0
      %1589 = vmatmul.mubr.f32.gmra.mrb[0].mxu0 %v1388
      %v1590 = vpop.f32.mrb[0].mxu0
      %v1591 = vadd.f32 %v1319, %v1590
      %v1592 = vpop.f32.mrb[0].mxu0
      %1593 = vmatprep.mubr.f32.mxu0 0.0
      %1594 = vmatmul.mubr.f32.gmra.mrb[0].mxu0 %v1391
      %v1595 = vpop.f32.mrb[0].mxu0
      %v1596 = vadd.f32 %v1319, %v1595
      %v1597 = vpop.f32.mrb[0].mxu0
      %1598 = vmatprep.mubr.f32.mxu0 0.0
      %1599 = vmatmul.mubr.f32.gmra.mrb[0].mxu0 %v1394
      %v1600 = vpop.f32.mrb[0].mxu0
      %v1601 = vadd.f32 %v1319, %v1600
      %v1602 = vpop.f32.mrb[0].mxu0
      %1603 = vmatprep.mubr.f32.mxu0 0.0
      %1604 = vmatmul.mubr.f32.gmra.mrb[0].mxu0 %v1397
      %v1605 = vpop.f32.mrb[0].mxu0
      %v1606 = vadd.f32 %v1319, %v1605
      %v1607 = vpop.f32.mrb[0].mxu0
      %1608 = vmatprep.mubr.f32.mxu0 0.0
      %1609 = vmatmul.mubr.f32.gmra.mrb[0].mxu0 %v1400
      %v1610 = vpop.f32.mrb[0].mxu0
      %v1611 = vadd.f32 %v1319, %v1610
      %v1612 = vpop.f32.mrb[0].mxu0
      %1613 = vmatprep.mubr.f32.mxu0 0.0
      %1614 = vmatmul.mubr.f32.gmra.mrb[0].mxu0 %v1403
      %v1615 = vpop.f32.mrb[0].mxu0
      %v1616 = vadd.f32 %v1319, %v1615
      %v1617 = vpop.f32.mrb[0].mxu0
      %1618 = vmatprep.mubr.f32.mxu0 0.0
      %1619 = vmatmul.mubr.f32.gmra.mrb[0].mxu0 %v1406
      %v1620 = vpop.f32.mrb[0].mxu0
      %v1621 = vadd.f32 %v1319, %v1620
      %v1622 = vpop.f32.mrb[0].mxu0
      %1623 = vmatprep.mubr.f32.mxu0 0.0
      %1624 = vmatmul.mubr.f32.gmra.mrb[0].mxu0 %v1409
      %v1625 = vpop.f32.mrb[0].mxu0
      %v1626 = vadd.f32 %v1319, %v1625
      %v1627 = vpop.f32.mrb[0].mxu0
      %1628 = vmatprep.mubr.f32.mxu0 0.0
      %1629 = vmatmul.mubr.f32.gmra.mrb[0].mxu0 %v1412
      %v1630 = vpop.f32.mrb[0].mxu0
      %v1631 = vadd.f32 %v1319, %v1630
      %v1632 = vpop.f32.mrb[0].mxu0
      %1633 = vdwg.mxu0
      %v1634 = vtanh.pop %v1481
      %v1635 = vtanh.pop %v1486
      %v1636 = vtanh.pop %v1491
      %v1637 = vtanh.pop %v1496
      %v1638 = vtanh.pop %v1501
      %v1639 = vtanh.pop %v1506
      %v1640 = vtanh.pop %v1511
      %v1641 = vtanh.pop %v1516
      %v1642 = vtanh.pop %v1521
      %v1643 = vtanh.pop %v1526
      %v1644 = vtanh.pop %v1531
      %v1645 = vtanh.pop %v1536
      %v1646 = vtanh.pop %v1541
      %v1647 = vtanh.pop %v1546
      %v1648 = vtanh.pop %v1551
      %v1649 = vtanh.pop %v1556
      %v1650 = vtanh.pop %v1561
      %v1651 = vtanh.pop %v1566
      %v1652 = vtanh.pop %v1571
      %v1653 = vtanh.pop %v1576
      %v1654 = vtanh.pop %v1581
      %v1655 = vtanh.pop %v1586
      %v1656 = vtanh.pop %v1591
      %v1657 = vtanh.pop %v1596
      %v1658 = vtanh.pop %v1601
      %v1659 = vtanh.pop %v1606
      %v1660 = vtanh.pop %v1611
      %v1661 = vtanh.pop %v1616
      %v1662 = vtanh.pop %v1621
      %v1663 = vtanh.pop %v1626
      %v1664 = vtanh.pop %v1631
      %v1665 = vld [vmem:[%s5] sm:$0xff]
      %v1666 = vld [vmem:[%s5 + $0x8] sm:$0xff]
      %v1667 = vld [vmem:[%s5 + $0x10] sm:$0xff]
      %v1668 = vld [vmem:[%s5 + $0x18] sm:$0xff]
      %v1669 = vld [vmem:[%s5 + $0x20] sm:$0xff]
      %v1670 = vld [vmem:[%s5 + $0x28] sm:$0xff]
      %v1671 = vld [vmem:[%s5 + $0x30] sm:$0xff]
      %v1672 = vld [vmem:[%s5 + $0x38] sm:$0xff]
      %v1673 = vld [vmem:[%s5 + $0x40] sm:$0xff]
      %v1674 = vld [vmem:[%s5 + $0x48] sm:$0xff]
      %v1675 = vld [vmem:[%s5 + $0x50] sm:$0xff]
      %v1676 = vld [vmem:[%s5 + $0x58] sm:$0xff]
      %v1677 = vlaneseq
      %v1678 = vshrl.u32 %v1677, 7
      %v1679 = vsub.s32 0, %v1678
      %v1680 = vrot.slane %v317, %v1679
      %vm1681 = vcmask 785408
      %v1683 = vsel %vm1681, %v1634, 0
      %v1686 = vsel %vm1681, %v1635, 0
      %v1689 = vsel %vm1681, %v1636, 0
      %v1692 = vsel %vm1681, %v1637, 0
      %v1695 = vsel %vm1681, %v1638, 0
      %v1698 = vsel %vm1681, %v1639, 0
      %v1701 = vsel %vm1681, %v1640, 0
      %v1704 = vsel %vm1681, %v1641, 0
      %v1707 = vsel %vm1681, %v1642, 0
      %v1710 = vsel %vm1681, %v1643, 0
      %v1713 = vsel %vm1681, %v1644, 0
      %v1716 = vsel %vm1681, %v1645, 0
      %v1719 = vsel %vm1681, %v1646, 0
      %v1722 = vsel %vm1681, %v1647, 0
      %v1725 = vsel %vm1681, %v1648, 0
      %v1728 = vsel %vm1681, %v1649, 0
      %v1731 = vsel %vm1681, %v1650, 0
      %v1734 = vsel %vm1681, %v1651, 0
      %v1737 = vsel %vm1681, %v1652, 0
      %v1740 = vsel %vm1681, %v1653, 0
      %v1743 = vsel %vm1681, %v1654, 0
      %v1746 = vsel %vm1681, %v1655, 0
      %v1749 = vsel %vm1681, %v1656, 0
      %v1752 = vsel %vm1681, %v1657, 0
      %v1755 = vsel %vm1681, %v1658, 0
      %v1758 = vsel %vm1681, %v1659, 0
      %v1761 = vsel %vm1681, %v1660, 0
      %v1764 = vsel %vm1681, %v1661, 0
      %v1767 = vsel %vm1681, %v1662, 0
      %v1770 = vsel %vm1681, %v1663, 0
      %v1773 = vsel %vm1681, %v1664, 0
      %1775 = vmatprep.subr.mxu0 0.0
      %1776 = vmatpush1.msra.mxu0 %v1665
      %1777 = vmatprep.subr.mxu0 0.0
      %1778 = vmatpush1.msra.mxu0 %v1666
      %1779 = vmatprep.subr.mxu0 0.0
      %1780 = vmatpush1.msra.mxu0 %v1667
      %1781 = vmatprep.subr.mxu0 0.0
      %1782 = vmatpush1.msra.mxu0 %v1668
      %1783 = vmatprep.subr.mxu0 0.0
      %1784 = vmatpush1.msra.mxu0 %v1669
      %1785 = vmatprep.subr.mxu0 0.0
      %1786 = vmatpush1.msra.mxu0 %v1670
      %1787 = vmatprep.subr.mxu0 0.0
      %1788 = vmatpush1.msra.mxu0 %v1671
      %1789 = vmatprep.subr.mxu0 0.0
      %1790 = vmatpush1.msra.mxu0 %v1672
      %1791 = vmatprep.subr.mxu0 0.0
      %1792 = vmatpush1.msra.mxu0 %v1673
      %1793 = vmatprep.subr.mxu0 0.0
      %1794 = vmatpush1.msra.mxu0 %v1674
      %1795 = vmatprep.subr.mxu0 0.0
      %1796 = vmatpush1.msra.mxu0 %v1675
      %1797 = vmatprep.subr.mxu0 0.0
      %1798 = vmatpush1.msra.mxu0 %v1676
      %1799 = vmatprep.subr.mxu0 0.0
      %1800 = vmatpush1.msra.mxu0 0.0
      %1801 = vmatprep.subr.mxu0 0.0
      %1802 = vmatpush1.msra.mxu0 0.0
      %1803 = vmatprep.subr.mxu0 0.0
      %1804 = vmatpush1.msra.mxu0 0.0
      %1805 = vmatprep.subr.mxu0 0.0
      %1806 = vmatpush1.msra.mxu0 0.0
      %1807 = vmatprep.subr.mxu0 0.0
      %1808 = vmatpush1.msra.mxu0 0.0
      %1809 = vmatprep.subr.mxu0 0.0
      %1810 = vmatpush1.msra.mxu0 0.0
      %1811 = vmatprep.subr.mxu0 0.0
      %1812 = vmatpush1.msra.mxu0 0.0
      %1813 = vmatprep.subr.mxu0 0.0
      %1814 = vmatpush1.msra.mxu0 0.0
      %1815 = vmatprep.subr.mxu0 0.0
      %1816 = vmatpush1.msra.mxu0 0.0
      %1817 = vmatprep.subr.mxu0 0.0
      %1818 = vmatpush1.msra.mxu0 0.0
      %1819 = vmatprep.subr.mxu0 0.0
      %1820 = vmatpush1.msra.mxu0 0.0
      %1821 = vmatprep.subr.mxu0 0.0
      %1822 = vmatpush1.msra.mxu0 0.0
      %1823 = vmatprep.subr.mxu0 0.0
      %1824 = vmatpush1.msra.mxu0 0.0
      %1825 = vmatprep.subr.mxu0 0.0
      %1826 = vmatpush1.msra.mxu0 0.0
      %1827 = vmatprep.subr.mxu0 0.0
      %1828 = vmatpush1.msra.mxu0 0.0
      %1829 = vmatprep.subr.mxu0 0.0
      %1830 = vmatpush1.msra.mxu0 0.0
      %1831 = vmatprep.subr.mxu0 0.0
      %1832 = vmatpush1.msra.mxu0 0.0
      %1833 = vmatprep.subr.mxu0 0.0
      %1834 = vmatpush1.msra.mxu0 0.0
      %1835 = vmatprep.subr.mxu0 0.0
      %1836 = vmatpush1.msra.mxu0 0.0
      %1837 = vmatprep.subr.mxu0 0.0
      %1838 = vmatpush1.msra.mxu0 0.0
      %1839 = vmatprep.mubr.f32.mxu0 0.0
      %1840 = vmatmul.mubr.f32.gmra.mrb[0].mxu0 %v1683
      %v1841 = vpop.f32.mrb[0].mxu0
      %v1842 = vadd.f32 %v1680, %v1841
      %v1843 = vpop.f32.mrb[0].mxu0
      %1844 = vmatprep.mubr.f32.mxu0 0.0
      %1845 = vmatmul.mubr.f32.gmra.mrb[0].mxu0 %v1686
      %v1846 = vpop.f32.mrb[0].mxu0
      %v1847 = vadd.f32 %v1680, %v1846
      %v1848 = vpop.f32.mrb[0].mxu0
      %1849 = vmatprep.mubr.f32.mxu0 0.0
      %1850 = vmatmul.mubr.f32.gmra.mrb[0].mxu0 %v1689
      %v1851 = vpop.f32.mrb[0].mxu0
      %v1852 = vadd.f32 %v1680, %v1851
      %v1853 = vpop.f32.mrb[0].mxu0
      %1854 = vmatprep.mubr.f32.mxu0 0.0
      %1855 = vmatmul.mubr.f32.gmra.mrb[0].mxu0 %v1692
      %v1856 = vpop.f32.mrb[0].mxu0
      %v1857 = vadd.f32 %v1680, %v1856
      %v1858 = vpop.f32.mrb[0].mxu0
      %1859 = vmatprep.mubr.f32.mxu0 0.0
      %1860 = vmatmul.mubr.f32.gmra.mrb[0].mxu0 %v1695
      %v1861 = vpop.f32.mrb[0].mxu0
      %v1862 = vadd.f32 %v1680, %v1861
      %v1863 = vpop.f32.mrb[0].mxu0
      %1864 = vmatprep.mubr.f32.mxu0 0.0
      %1865 = vmatmul.mubr.f32.gmra.mrb[0].mxu0 %v1698
      %v1866 = vpop.f32.mrb[0].mxu0
      %v1867 = vadd.f32 %v1680, %v1866
      %v1868 = vpop.f32.mrb[0].mxu0
      %1869 = vmatprep.mubr.f32.mxu0 0.0
      %1870 = vmatmul.mubr.f32.gmra.mrb[0].mxu0 %v1701
      %v1871 = vpop.f32.mrb[0].mxu0
      %v1872 = vadd.f32 %v1680, %v1871
      %v1873 = vpop.f32.mrb[0].mxu0
      %1874 = vmatprep.mubr.f32.mxu0 0.0
      %1875 = vmatmul.mubr.f32.gmra.mrb[0].mxu0 %v1704
      %v1876 = vpop.f32.mrb[0].mxu0
      %v1877 = vadd.f32 %v1680, %v1876
      %v1878 = vpop.f32.mrb[0].mxu0
      %1879 = vmatprep.mubr.f32.mxu0 0.0
      %1880 = vmatmul.mubr.f32.gmra.mrb[0].mxu0 %v1707
      %v1881 = vpop.f32.mrb[0].mxu0
      %v1882 = vadd.f32 %v1680, %v1881
      %v1883 = vpop.f32.mrb[0].mxu0
      %1884 = vmatprep.mubr.f32.mxu0 0.0
      %1885 = vmatmul.mubr.f32.gmra.mrb[0].mxu0 %v1710
      %v1886 = vpop.f32.mrb[0].mxu0
      %v1887 = vadd.f32 %v1680, %v1886
      %v1888 = vpop.f32.mrb[0].mxu0
      %1889 = vmatprep.mubr.f32.mxu0 0.0
      %1890 = vmatmul.mubr.f32.gmra.mrb[0].mxu0 %v1713
      %v1891 = vpop.f32.mrb[0].mxu0
      %v1892 = vadd.f32 %v1680, %v1891
      %v1893 = vpop.f32.mrb[0].mxu0
      %1894 = vmatprep.mubr.f32.mxu0 0.0
      %1895 = vmatmul.mubr.f32.gmra.mrb[0].mxu0 %v1716
      %v1896 = vpop.f32.mrb[0].mxu0
      %v1897 = vadd.f32 %v1680, %v1896
      %v1898 = vpop.f32.mrb[0].mxu0
      %1899 = vmatprep.mubr.f32.mxu0 0.0
      %1900 = vmatmul.mubr.f32.gmra.mrb[0].mxu0 %v1719
      %v1901 = vpop.f32.mrb[0].mxu0
      %v1902 = vadd.f32 %v1680, %v1901
      %v1903 = vpop.f32.mrb[0].mxu0
      %1904 = vmatprep.mubr.f32.mxu0 0.0
      %1905 = vmatmul.mubr.f32.gmra.mrb[0].mxu0 %v1722
      %v1906 = vpop.f32.mrb[0].mxu0
      %v1907 = vadd.f32 %v1680, %v1906
      %v1908 = vpop.f32.mrb[0].mxu0
      %1909 = vmatprep.mubr.f32.mxu0 0.0
      %1910 = vmatmul.mubr.f32.gmra.mrb[0].mxu0 %v1725
      %v1911 = vpop.f32.mrb[0].mxu0
      %v1912 = vadd.f32 %v1680, %v1911
      %v1913 = vpop.f32.mrb[0].mxu0
      %1914 = vmatprep.mubr.f32.mxu0 0.0
      %1915 = vmatmul.mubr.f32.gmra.mrb[0].mxu0 %v1728
      %v1916 = vpop.f32.mrb[0].mxu0
      %v1917 = vadd.f32 %v1680, %v1916
      %v1918 = vpop.f32.mrb[0].mxu0
      %1919 = vmatprep.mubr.f32.mxu0 0.0
      %1920 = vmatmul.mubr.f32.gmra.mrb[0].mxu0 %v1731
      %v1921 = vpop.f32.mrb[0].mxu0
      %v1922 = vadd.f32 %v1680, %v1921
      %v1923 = vpop.f32.mrb[0].mxu0
      %1924 = vmatprep.mubr.f32.mxu0 0.0
      %1925 = vmatmul.mubr.f32.gmra.mrb[0].mxu0 %v1734
      %v1926 = vpop.f32.mrb[0].mxu0
      %v1927 = vadd.f32 %v1680, %v1926
      %v1928 = vpop.f32.mrb[0].mxu0
      %1929 = vmatprep.mubr.f32.mxu0 0.0
      %1930 = vmatmul.mubr.f32.gmra.mrb[0].mxu0 %v1737
      %v1931 = vpop.f32.mrb[0].mxu0
      %v1932 = vadd.f32 %v1680, %v1931
      %v1933 = vpop.f32.mrb[0].mxu0
      %1934 = vmatprep.mubr.f32.mxu0 0.0
      %1935 = vmatmul.mubr.f32.gmra.mrb[0].mxu0 %v1740
      %v1936 = vpop.f32.mrb[0].mxu0
      %v1937 = vadd.f32 %v1680, %v1936
      %v1938 = vpop.f32.mrb[0].mxu0
      %1939 = vmatprep.mubr.f32.mxu0 0.0
      %1940 = vmatmul.mubr.f32.gmra.mrb[0].mxu0 %v1743
      %v1941 = vpop.f32.mrb[0].mxu0
      %v1942 = vadd.f32 %v1680, %v1941
      %v1943 = vpop.f32.mrb[0].mxu0
      %1944 = vmatprep.mubr.f32.mxu0 0.0
      %1945 = vmatmul.mubr.f32.gmra.mrb[0].mxu0 %v1746
      %v1946 = vpop.f32.mrb[0].mxu0
      %v1947 = vadd.f32 %v1680, %v1946
      %v1948 = vpop.f32.mrb[0].mxu0
      %1949 = vmatprep.mubr.f32.mxu0 0.0
      %1950 = vmatmul.mubr.f32.gmra.mrb[0].mxu0 %v1749
      %v1951 = vpop.f32.mrb[0].mxu0
      %v1952 = vadd.f32 %v1680, %v1951
      %v1953 = vpop.f32.mrb[0].mxu0
      %1954 = vmatprep.mubr.f32.mxu0 0.0
      %1955 = vmatmul.mubr.f32.gmra.mrb[0].mxu0 %v1752
      %v1956 = vpop.f32.mrb[0].mxu0
      %v1957 = vadd.f32 %v1680, %v1956
      %v1958 = vpop.f32.mrb[0].mxu0
      %1959 = vmatprep.mubr.f32.mxu0 0.0
      %1960 = vmatmul.mubr.f32.gmra.mrb[0].mxu0 %v1755
      %v1961 = vpop.f32.mrb[0].mxu0
      %v1962 = vadd.f32 %v1680, %v1961
      %v1963 = vpop.f32.mrb[0].mxu0
      %1964 = vmatprep.mubr.f32.mxu0 0.0
      %1965 = vmatmul.mubr.f32.gmra.mrb[0].mxu0 %v1758
      %v1966 = vpop.f32.mrb[0].mxu0
      %v1967 = vadd.f32 %v1680, %v1966
      %v1968 = vpop.f32.mrb[0].mxu0
      %1969 = vmatprep.mubr.f32.mxu0 0.0
      %1970 = vmatmul.mubr.f32.gmra.mrb[0].mxu0 %v1761
      %v1971 = vpop.f32.mrb[0].mxu0
      %v1972 = vadd.f32 %v1680, %v1971
      %v1973 = vpop.f32.mrb[0].mxu0
      %1974 = vmatprep.mubr.f32.mxu0 0.0
      %1975 = vmatmul.mubr.f32.gmra.mrb[0].mxu0 %v1764
      %v1976 = vpop.f32.mrb[0].mxu0
      %v1977 = vadd.f32 %v1680, %v1976
      %v1978 = vpop.f32.mrb[0].mxu0
      %1979 = vmatprep.mubr.f32.mxu0 0.0
      %1980 = vmatmul.mubr.f32.gmra.mrb[0].mxu0 %v1767
      %v1981 = vpop.f32.mrb[0].mxu0
      %v1982 = vadd.f32 %v1680, %v1981
      %v1983 = vpop.f32.mrb[0].mxu0
      %1984 = vmatprep.mubr.f32.mxu0 0.0
      %1985 = vmatmul.mubr.f32.gmra.mrb[0].mxu0 %v1770
      %v1986 = vpop.f32.mrb[0].mxu0
      %v1987 = vadd.f32 %v1680, %v1986
      %v1988 = vpop.f32.mrb[0].mxu0
      %1989 = vmatprep.mubr.f32.mxu0 0.0
      %1990 = vmatmul.mubr.f32.gmra.mrb[0].mxu0 %v1773
      %v1991 = vpop.f32.mrb[0].mxu0
      %v1992 = vadd.f32 %v1680, %v1991
      %v1993 = vpop.f32.mrb[0].mxu0
      %1994 = vdwg.mxu0
      %1995 = vst.msk [vmem:[%s280] sm:$0xff] %vm1320, %v1277
      %1996 = vst.msk [vmem:[%s280 + $0x8] sm:$0xff] %vm1320, %v1278
      %1997 = vst.msk [vmem:[%s280 + $0x10] sm:$0xff] %vm1320, %v1279
      %1998 = vst.msk [vmem:[%s280 + $0x18] sm:$0xff] %vm1320, %v1280
      %1999 = vst.msk [vmem:[%s280 + $0x20] sm:$0xff] %vm1320, %v1281
      %2000 = vst.msk [vmem:[%s280 + $0x28] sm:$0xff] %vm1320, %v1282
      %2001 = vst.msk [vmem:[%s280 + $0x30] sm:$0xff] %vm1320, %v1283
      %2002 = vst.msk [vmem:[%s280 + $0x38] sm:$0xff] %vm1320, %v1284
      %2003 = vst.msk [vmem:[%s280 + $0x40] sm:$0xff] %vm1320, %v1285
      %2004 = vst.msk [vmem:[%s280 + $0x48] sm:$0xff] %vm1320, %v1286
      %2005 = vst.msk [vmem:[%s280 + $0x50] sm:$0xff] %vm1320, %v1287
      %2006 = vst.msk [vmem:[%s280 + $0x58] sm:$0xff] %vm1320, %v1288
      %2007 = vst.msk [vmem:[%s280 + $0x60] sm:$0xff] %vm1320, %v1289
      %2008 = vst.msk [vmem:[%s280 + $0x68] sm:$0xff] %vm1320, %v1290
      %2009 = vst.msk [vmem:[%s280 + $0x70] sm:$0xff] %vm1320, %v1291
      %2010 = vst.msk [vmem:[%s280 + $0x78] sm:$0xff] %vm1320, %v1292
      %2011 = vst.msk [vmem:[%s280 + $0x80] sm:$0xff] %vm1320, %v1293
      %2012 = vst.msk [vmem:[%s280 + $0x88] sm:$0xff] %vm1320, %v1294
      %2013 = vst.msk [vmem:[%s280 + $0x90] sm:$0xff] %vm1320, %v1295
      %2014 = vst.msk [vmem:[%s280 + $0x98] sm:$0xff] %vm1320, %v1296
      %2015 = vst.msk [vmem:[%s280 + $0xa0] sm:$0xff] %vm1320, %v1297
      %2016 = vst.msk [vmem:[%s280 + $0xa8] sm:$0xff] %vm1320, %v1298
      %2017 = vst.msk [vmem:[%s280 + $0xb0] sm:$0xff] %vm1320, %v1299
      %2018 = vst.msk [vmem:[%s280 + $0xb8] sm:$0xff] %vm1320, %v1300
      %2019 = vst.msk [vmem:[%s280 + $0xc0] sm:$0xff] %vm1320, %v1301
      %2020 = vst.msk [vmem:[%s280 + $0xc8] sm:$0xff] %vm1320, %v1302
      %2021 = vst.msk [vmem:[%s280 + $0xd0] sm:$0xff] %vm1320, %v1303
      %2022 = vst.msk [vmem:[%s280 + $0xd8] sm:$0xff] %vm1320, %v1304
      %2023 = vst.msk [vmem:[%s280 + $0xe0] sm:$0xff] %vm1320, %v1305
      %2024 = vst.msk [vmem:[%s280 + $0xe8] sm:$0xff] %vm1320, %v1306
      %2025 = vst.msk [vmem:[%s280 + $0xf0] sm:$0xff] %vm1320, %v1307
      %2057 = vrot.lane.b32.xlu0 %v1842, 64
      %v2058 = vpop.permute.xlu0 %2057
      %2059 = vrot.lane.b32.xlu0 %v1847, 64
      %v2060 = vpop.permute.xlu0 %2059
      %2061 = vrot.lane.b32.xlu0 %v1852, 64
      %v2062 = vpop.permute.xlu0 %2061
      %2063 = vrot.lane.b32.xlu0 %v1857, 64
      %v2064 = vpop.permute.xlu0 %2063
      %2065 = vrot.lane.b32.xlu0 %v1862, 64
      %v2066 = vpop.permute.xlu0 %2065
      %2067 = vrot.lane.b32.xlu0 %v1867, 64
      %v2068 = vpop.permute.xlu0 %2067
      %2069 = vrot.lane.b32.xlu0 %v1872, 64
      %v2070 = vpop.permute.xlu0 %2069
      %2071 = vrot.lane.b32.xlu0 %v1877, 64
      %v2072 = vpop.permute.xlu0 %2071
      %2073 = vrot.lane.b32.xlu0 %v1882, 64
      %v2074 = vpop.permute.xlu0 %2073
      %2075 = vrot.lane.b32.xlu0 %v1887, 64
      %v2076 = vpop.permute.xlu0 %2075
      %2077 = vrot.lane.b32.xlu0 %v1892, 64
      %v2078 = vpop.permute.xlu0 %2077
      %2079 = vrot.lane.b32.xlu0 %v1897, 64
      %v2080 = vpop.permute.xlu0 %2079
      %2081 = vrot.lane.b32.xlu0 %v1902, 64
      %v2082 = vpop.permute.xlu0 %2081
      %2083 = vrot.lane.b32.xlu0 %v1907, 64
      %v2084 = vpop.permute.xlu0 %2083
      %2085 = vrot.lane.b32.xlu0 %v1912, 64
      %v2086 = vpop.permute.xlu0 %2085
      %2087 = vrot.lane.b32.xlu0 %v1917, 64
      %v2088 = vpop.permute.xlu0 %2087
      %2089 = vrot.lane.b32.xlu0 %v1922, 64
      %v2090 = vpop.permute.xlu0 %2089
      %2091 = vrot.lane.b32.xlu0 %v1927, 64
      %v2092 = vpop.permute.xlu0 %2091
      %2093 = vrot.lane.b32.xlu0 %v1932, 64
      %v2094 = vpop.permute.xlu0 %2093
      %2095 = vrot.lane.b32.xlu0 %v1937, 64
      %v2096 = vpop.permute.xlu0 %2095
      %2097 = vrot.lane.b32.xlu0 %v1942, 64
      %v2098 = vpop.permute.xlu0 %2097
      %2099 = vrot.lane.b32.xlu0 %v1947, 64
      %v2100 = vpop.permute.xlu0 %2099
      %2101 = vrot.lane.b32.xlu0 %v1952, 64
      %v2102 = vpop.permute.xlu0 %2101
      %2103 = vrot.lane.b32.xlu0 %v1957, 64
      %v2104 = vpop.permute.xlu0 %2103
      %2105 = vrot.lane.b32.xlu0 %v1962, 64
      %v2106 = vpop.permute.xlu0 %2105
      %2107 = vrot.lane.b32.xlu0 %v1967, 64
      %v2108 = vpop.permute.xlu0 %2107
      %2109 = vrot.lane.b32.xlu0 %v1972, 64
      %v2110 = vpop.permute.xlu0 %2109
      %2111 = vrot.lane.b32.xlu0 %v1977, 64
      %v2112 = vpop.permute.xlu0 %2111
      %2113 = vrot.lane.b32.xlu0 %v1982, 64
      %v2114 = vpop.permute.xlu0 %2113
      %2115 = vrot.lane.b32.xlu0 %v1987, 64
      %v2116 = vpop.permute.xlu0 %2115
      %2117 = vrot.lane.b32.xlu0 %v1992, 64
      %v2118 = vpop.permute.xlu0 %2117
      %vm2150 = vcmask 1048064
      %2151 = vst.msk [vmem:[%s280] sm:$0xff] %vm2150, %v2058
      %2152 = vst.msk [vmem:[%s280 + $0x8] sm:$0xff] %vm2150, %v2060
      %2153 = vst.msk [vmem:[%s280 + $0x10] sm:$0xff] %vm2150, %v2062
      %2154 = vst.msk [vmem:[%s280 + $0x18] sm:$0xff] %vm2150, %v2064
      %2155 = vst.msk [vmem:[%s280 + $0x20] sm:$0xff] %vm2150, %v2066
      %2156 = vst.msk [vmem:[%s280 + $0x28] sm:$0xff] %vm2150, %v2068
      %2157 = vst.msk [vmem:[%s280 + $0x30] sm:$0xff] %vm2150, %v2070
      %2158 = vst.msk [vmem:[%s280 + $0x38] sm:$0xff] %vm2150, %v2072
      %2159 = vst.msk [vmem:[%s280 + $0x40] sm:$0xff] %vm2150, %v2074
      %2160 = vst.msk [vmem:[%s280 + $0x48] sm:$0xff] %vm2150, %v2076
      %2161 = vst.msk [vmem:[%s280 + $0x50] sm:$0xff] %vm2150, %v2078
      %2162 = vst.msk [vmem:[%s280 + $0x58] sm:$0xff] %vm2150, %v2080
      %2163 = vst.msk [vmem:[%s280 + $0x60] sm:$0xff] %vm2150, %v2082
      %2164 = vst.msk [vmem:[%s280 + $0x68] sm:$0xff] %vm2150, %v2084
      %2165 = vst.msk [vmem:[%s280 + $0x70] sm:$0xff] %vm2150, %v2086
      %2166 = vst.msk [vmem:[%s280 + $0x78] sm:$0xff] %vm2150, %v2088
      %2167 = vst.msk [vmem:[%s280 + $0x80] sm:$0xff] %vm2150, %v2090
      %2168 = vst.msk [vmem:[%s280 + $0x88] sm:$0xff] %vm2150, %v2092
      %2169 = vst.msk [vmem:[%s280 + $0x90] sm:$0xff] %vm2150, %v2094
      %2170 = vst.msk [vmem:[%s280 + $0x98] sm:$0xff] %vm2150, %v2096
      %2171 = vst.msk [vmem:[%s280 + $0xa0] sm:$0xff] %vm2150, %v2098
      %2172 = vst.msk [vmem:[%s280 + $0xa8] sm:$0xff] %vm2150, %v2100
      %2173 = vst.msk [vmem:[%s280 + $0xb0] sm:$0xff] %vm2150, %v2102
      %2174 = vst.msk [vmem:[%s280 + $0xb8] sm:$0xff] %vm2150, %v2104
      %2175 = vst.msk [vmem:[%s280 + $0xc0] sm:$0xff] %vm2150, %v2106
      %2176 = vst.msk [vmem:[%s280 + $0xc8] sm:$0xff] %vm2150, %v2108
      %2177 = vst.msk [vmem:[%s280 + $0xd0] sm:$0xff] %vm2150, %v2110
      %2178 = vst.msk [vmem:[%s280 + $0xd8] sm:$0xff] %vm2150, %v2112
      %2179 = vst.msk [vmem:[%s280 + $0xe0] sm:$0xff] %vm2150, %v2114
      %2180 = vst.msk [vmem:[%s280 + $0xe8] sm:$0xff] %vm2150, %v2116
      %2181 = vst.msk [vmem:[%s280 + $0xf0] sm:$0xff] %vm2150, %v2118
      %s2182 = smul.u32 31, %s18
      %p2183 = scmp.lt.s32.totalorder %s2182, 92
      %s2184 = scalar_select %p2183, %s2182, 92
      %s2185 = smul.addr %s2184, 8
      %s2186 = scalar_lea.vmem %s7, %s2185
      // Predicated region
      $region49: #{mhd_pinns_forward.1} parent=47 // pred_check
        %p2187 = pneg %p188
      $region50: #{mhd_pinns_forward.1} parent=47 // pred_check_branch
        %2189 = sbr.rel (%p2187) target = $region52
      $region51: #{mhd_pinns_forward.1} parent=47 // pred_region
        %s2190 = smul.u32 31, %s18
      $region52: #{mhd_pinns_forward.1} parent=47 // pred_fallthru
        _
    $region48: #{mhd_pinns_forward.1} parent=5 // pred_fallthru
      _
    %p2191 = scmp.le.s32.totalorder 2, %s13
    // Predicated region
    $region53: #{mhd_pinns_forward.1} parent=5 // pred_check
      %p2192 = pneg %p2191
    $region54: #{mhd_pinns_forward.1} parent=5 // pred_check_branch
      %2194 = sbr.rel (%p2192) target = $region56
    $region55: #{mhd_pinns_forward.1} parent=5 // pred_region
      %s2195 = ssub.s32 %s13, 2
      // Predicated region
      $region57: #{mhd_pinns_forward.1} parent=55 // pred_check
        %p2196 = pneg %p194
      $region58: #{mhd_pinns_forward.1} parent=55 // pred_check_branch
        %2198 = sbr.rel (%p2196) target = $region60
      $region59: #{mhd_pinns_forward.1} parent=55 // pred_region
        %s2199 = smul.u32 31, %s19
        %p2200 = scmp.lt.s32.totalorder %s2199, 92
        %s2201 = scalar_select %p2200, %s2199, 92
        %s2202 = smul.addr %s2201, 8
        %s2203 = scalar_lea.vmem %s7, %s2202
      $region60: #{mhd_pinns_forward.1} parent=55 // pred_fallthru
        _
    $region56: #{mhd_pinns_forward.1} parent=5 // pred_fallthru
      _
  $region6: #{mhd_pinns_forward.1} parent=0 // loop_footer
    %s17 = sadd.s32 1, %s13
  $region7: #{mhd_pinns_forward.1} parent=0 // loop_footer_branch
    %12 = sbr.rel target = $region3
  $region8: #{mhd_pinns_forward.1} parent=0 // loop_exit
    _

</llo_original>
